<compile_context>
chip_gen: v7x
topology: tpu7x:2x2x1
jax: 0.10.0
libtpu: 0.0.40
codegen_flags: <defaults>
</compile_context>

<pallas_src>
import math

import numpy as np

import jax
import jax.numpy as jnp
from jax.experimental import pallas as pl
from jax.experimental.pallas import tpu as pltpu


# ----------------------------------------------------------------------------
# Scalar helpers used inside the kernel (pure Python over traced scalars).
# ----------------------------------------------------------------------------
def _taylor_ABC(x2, nth=10):
    """Truncated even Taylor series of
       A = sin(x)/x, B = (1-cos x)/x^2, C = (x - sin x)/x^3, given x^2.
       Denominators folded into compile-time constants; powers of x^2 shared."""
    A = 0.0
    B = 0.0
    C = 0.0
    denomA = 1.0
    denomB = 1.0
    denomC = 1.0
    xp = 1.0
    for i in range(nth + 1):
        if i > 0:
            denomA = denomA * (2 * i) * (2 * i + 1)
        denomB = denomB * (2 * i + 1) * (2 * i + 2)
        denomC = denomC * (2 * i + 2) * (2 * i + 3)
        sign = -1.0 if (i & 1) else 1.0
        A = A + xp * (sign / denomA)
        B = B + xp * (sign / denomB)
        C = C + xp * (sign / denomC)
        xp = xp * x2
    return A, B, C


def _det3_cols(c0, c1, c2):
    """Determinant of the 3x3 whose columns are the 3-vectors c0, c1, c2."""
    return (c0[0] * (c1[1] * c2[2] - c1[2] * c2[1])
            - c1[0] * (c0[1] * c2[2] - c0[2] * c2[1])
            + c2[0] * (c0[1] * c1[2] - c0[2] * c1[1]))


# ----------------------------------------------------------------------------
# The Pallas kernel: entire Camera_Pose.forward (+ .update()), scalar-only.
#
# Input  (SMEM, f32[38]):  [0:3]  w,  [3:6]  v,
#                          [6:22] start_pose_w2c (row-major),
#                          [22:38] projection_matrix (= P.T, row-major)
# Output (SMEM, f32[51]):  [0:16]  pose_w2c,
#                          [16:32] world_view_transform,
#                          [32:48] full_proj_transform,
#                          [48:51] camera_center
# ----------------------------------------------------------------------------
def _camera_pose_kernel(in_ref, out_ref):
    # --- unpack flattened SMEM input ----------------------------------------
    w0, w1, w2 = in_ref[0], in_ref[1], in_ref[2]
    v0, v1, v2 = in_ref[3], in_ref[4], in_ref[5]
    start = [[in_ref[6 + 4 * i + j] for j in range(4)] for i in range(4)]
    proj = [[in_ref[22 + 4 * i + j] for j in range(4)] for i in range(4)]

    # --- se3_to_SE3(w, v): SE(3) exponential map (Taylor coefficients) ------
    t2 = w0 * w0 + w1 * w1 + w2 * w2            # theta^2 (all series are even)
    A, B, C = _taylor_ABC(t2)

    wx = [[0.0, -w2, w1],
          [w2, 0.0, -w0],
          [-w1, w0, 0.0]]
    wx2 = [[sum(wx[i][k] * wx[k][j] for k in range(3)) for j in range(3)]
           for i in range(3)]
    R = [[(1.0 if i == j else 0.0) + A * wx[i][j] + B * wx2[i][j]
          for j in range(3)] for i in range(3)]
    Vm = [[(1.0 if i == j else 0.0) + B * wx[i][j] + C * wx2[i][j]
           for j in range(3)] for i in range(3)]
    vv = [v0, v1, v2]
    t = [sum(Vm[i][k] * vv[k] for k in range(3)) for i in range(3)]
    # deltaT = [[R, t], [0 0 0 1]]   (kept implicitly; never materialized)

    # --- pose_w2c = (deltaT @ start^-1)^-1 = start @ deltaT^-1 --------------
    # deltaT is SE(3) by construction, so deltaT^-1 = [R^T | -R^T t; 0 0 0 1].
    Rt_t = [sum(R[k][i] * t[k] for k in range(3)) for i in range(3)]   # R^T t
    pose = [[None] * 4 for _ in range(4)]
    for i in range(4):
        for j in range(3):
            pose[i][j] = sum(start[i][k] * R[j][k] for k in range(3))
        pose[i][3] = start[i][3] - sum(start[i][k] * Rt_t[k] for k in range(3))

    # --- world_view_transform = pose_w2c.transpose(0, 1) --------------------
    Wm = [[pose[j][i] for j in range(4)] for i in range(4)]

    # --- full_proj_transform = world_view_transform @ projection_matrix -----
    fpt = [[sum(Wm[i][k] * proj[k][j] for k in range(4)) for j in range(4)]
           for i in range(4)]

    # --- camera_center = world_view_transform.inverse()[3, :3] --------------
    # (pose^T)^-1 row 3  ==  column 3 of pose^-1  ==  (deltaT @ start^-1)[:3,3]
    # Only the last column of start^-1 is needed: cofactors of row 3 / det.
    col = [[start[r][j] for r in range(3)] for j in range(4)]   # columns, rows 0..2
    m30 = _det3_cols(col[1], col[2], col[3])
    m31 = _det3_cols(col[0], col[2], col[3])
    m32 = _det3_cols(col[0], col[1], col[3])
    m33 = _det3_cols(col[0], col[1], col[2])
    cof = [-m30, m31, -m32, m33]                                # C[3][j]
    det = sum(start[3][j] * cof[j] for j in range(4))
    inv_det = 1.0 / det
    x = [cof[j] * inv_det for j in range(4)]                    # start^-1[:, 3]
    cc = [sum(R[i][k] * x[k] for k in range(3)) + t[i] * x[3]   # (deltaT @ x)[:3]
          for i in range(3)]

    # --- write flattened SMEM output (scalar stores, no vector assembly) ----
    for i in range(4):
        for j in range(4):
            out_ref[4 * i + j] = pose[i][j]
            out_ref[16 + 4 * i + j] = Wm[i][j]
            out_ref[32 + 4 * i + j] = fpt[i][j]
    out_ref[48] = cc[0]
    out_ref[49] = cc[1]
    out_ref[50] = cc[2]


# ----------------------------------------------------------------------------
# Plain-JAX / NumPy glue.
# ----------------------------------------------------------------------------
def get_projection_matrix(znear, zfar, fovX, fovY):
    tanHalfFovY = math.tan(fovY / 2)
    tanHalfFovX = math.tan(fovX / 2)
    top = tanHalfFovY * znear
    bottom = -top
    right = tanHalfFovX * znear
    left = -right
    P = np.zeros((4, 4), dtype=np.float32)
    z_sign = 1.0
    P[0, 0] = 2.0 * znear / (right - left)
    P[1, 1] = 2.0 * znear / (top - bottom)
    P[0, 2] = (right + left) / (right - left)
    P[1, 2] = (top + bottom) / (top - bottom)
    P[3, 2] = z_sign
    P[2, 2] = z_sign * zfar / (zfar - znear)
    P[2, 3] = -(zfar * znear) / (zfar - znear)
    return P


def camera_pose_forward(w, v, start_pose_w2c, FoVx, FoVy,
                        znear=0.01, zfar=100.0):
    """Equivalent of Camera_Pose.forward(start_pose_w2c) + update()."""
    proj_t = jnp.asarray(get_projection_matrix(znear, zfar, FoVx, FoVy).T,
                         jnp.float32)
    packed_in = jnp.concatenate([
        jnp.asarray(w, jnp.float32).reshape(-1),
        jnp.asarray(v, jnp.float32).reshape(-1),
        jnp.asarray(start_pose_w2c, jnp.float32).reshape(-1),
        proj_t.reshape(-1),
    ])

    packed_out = pl.pallas_call(
        _camera_pose_kernel,
        out_shape=jax.ShapeDtypeStruct((51,), jnp.float32),
        in_specs=[pl.BlockSpec(memory_space=pltpu.MemorySpace.SMEM)],
        out_specs=pl.BlockSpec(memory_space=pltpu.MemorySpace.SMEM),
    )(packed_in)

    pose = packed_out[0:16].reshape(4, 4)
    wvt = packed_out[16:32].reshape(4, 4)
    fpt = packed_out[32:48].reshape(4, 4)
    cc = packed_out[48:51]
    return {
        "pose_w2c": pose,
        "world_view_transform": wvt,
        "projection_matrix": proj_t,
        "full_proj_transform": fpt,
        "camera_center": cc,
    }


def _reference(w, v, start, proj_t):
    """Pure-JAX reference (torch semantics) used only as a sanity check."""
    t2 = jnp.sum(w * w)
    A, B, C = _taylor_ABC(t2)
    w0, w1, w2 = w[0], w[1], w[2]
    z = jnp.zeros_like(w0)
    wx = jnp.stack([jnp.stack([z, -w2, w1]),
                    jnp.stack([w2, z, -w0]),
                    jnp.stack([-w1, w0, z])])
    I3 = jnp.eye(3, dtype=jnp.float32)
    R = I3 + A * wx + B * (wx @ wx)
    Vm = I3 + B * wx + C * (wx @ wx)
    dT = jnp.eye(4, dtype=jnp.float32)
    dT = dT.at[:3, :3].set(R).at[:3, 3].set(Vm @ v)
    pose = jnp.linalg.inv(dT @ jnp.linalg.inv(start))
    wvt = pose.T
    fpt = wvt @ proj_t
    cc = jnp.linalg.inv(wvt)[3, :3]
    return pose, wvt, fpt, cc


if __name__ == "__main__":
    key = jax.random.PRNGKey(0)
    kw, kv = jax.random.split(key)
    # nn.Parameter(torch.normal(0.0, 1e-6, size=(3,))) analogue, deterministic.
    w = 1e-6 * jax.random.normal(kw, (3,), dtype=jnp.float32)
    v = 1e-6 * jax.random.normal(kv, (3,), dtype=jnp.float32)

    # Deterministic starting world->camera pose (rotation + translation).
    ax, ay = 0.3, -0.2
    Rx = np.array([[1, 0, 0],
                   [0, math.cos(ax), -math.sin(ax)],
                   [0, math.sin(ax), math.cos(ax)]], dtype=np.float32)
    Ry = np.array([[math.cos(ay), 0, math.sin(ay)],
                   [0, 1, 0],
                   [-math.sin(ay), 0, math.cos(ay)]], dtype=np.float32)
    start = np.eye(4, dtype=np.float32)
    start[:3, :3] = Ry @ Rx
    start[:3, 3] = np.array([0.5, -0.3, 2.0], dtype=np.float32)
    start = jnp.asarray(start)

    FoVx = math.radians(60.0)
    FoVy = math.radians(45.0)

    out = camera_pose_forward(w, v, start, FoVx, FoVy)
    jax.block_until_ready(out)

    ref_pose, ref_wvt, ref_fpt, ref_cc = _reference(
        w, v, start, out["projection_matrix"])
    assert jnp.allclose(out["pose_w2c"], ref_pose, atol=2e-3, rtol=2e-3)
    assert jnp.allclose(out["world_view_transform"], ref_wvt, atol=2e-3, rtol=2e-3)
    assert jnp.allclose(out["full_proj_transform"], ref_fpt, atol=2e-3, rtol=2e-3)
    assert jnp.allclose(out["camera_center"], ref_cc, atol=2e-3, rtol=2e-3)

    print("KERNEL_OK")
</pallas_src>

<mosaic_0001>
module attributes {stable_mosaic.version = 11 : i64} {
  func.func @_camera_pose_kernel(%arg0: memref<38xf32, #tpu.memory_space<smem>>, %arg1: memref<51xf32, #tpu.memory_space<smem>>) attributes {dimension_semantics = [], scalar_prefetch = 0 : i64, scratch_operands = 0 : i64, tpu.core_type = #tpu.core_type<tc>} {
    %c0 = arith.constant 0 : index
    %0 = memref.load %arg0[%c0] : memref<38xf32, #tpu.memory_space<smem>>
    %c1 = arith.constant 1 : index
    %1 = memref.load %arg0[%c1] : memref<38xf32, #tpu.memory_space<smem>>
    %c2 = arith.constant 2 : index
    %2 = memref.load %arg0[%c2] : memref<38xf32, #tpu.memory_space<smem>>
    %c3 = arith.constant 3 : index
    %3 = memref.load %arg0[%c3] : memref<38xf32, #tpu.memory_space<smem>>
    %c4 = arith.constant 4 : index
    %4 = memref.load %arg0[%c4] : memref<38xf32, #tpu.memory_space<smem>>
    %c5 = arith.constant 5 : index
    %5 = memref.load %arg0[%c5] : memref<38xf32, #tpu.memory_space<smem>>
    %c6 = arith.constant 6 : index
    %6 = memref.load %arg0[%c6] : memref<38xf32, #tpu.memory_space<smem>>
    %c7 = arith.constant 7 : index
    %7 = memref.load %arg0[%c7] : memref<38xf32, #tpu.memory_space<smem>>
    %c8 = arith.constant 8 : index
    %8 = memref.load %arg0[%c8] : memref<38xf32, #tpu.memory_space<smem>>
    %c9 = arith.constant 9 : index
    %9 = memref.load %arg0[%c9] : memref<38xf32, #tpu.memory_space<smem>>
    %c10 = arith.constant 10 : index
    %10 = memref.load %arg0[%c10] : memref<38xf32, #tpu.memory_space<smem>>
    %c11 = arith.constant 11 : index
    %11 = memref.load %arg0[%c11] : memref<38xf32, #tpu.memory_space<smem>>
    %c12 = arith.constant 12 : index
    %12 = memref.load %arg0[%c12] : memref<38xf32, #tpu.memory_space<smem>>
    %c13 = arith.constant 13 : index
    %13 = memref.load %arg0[%c13] : memref<38xf32, #tpu.memory_space<smem>>
    %c14 = arith.constant 14 : index
    %14 = memref.load %arg0[%c14] : memref<38xf32, #tpu.memory_space<smem>>
    %c15 = arith.constant 15 : index
    %15 = memref.load %arg0[%c15] : memref<38xf32, #tpu.memory_space<smem>>
    %c16 = arith.constant 16 : index
    %16 = memref.load %arg0[%c16] : memref<38xf32, #tpu.memory_space<smem>>
    %c17 = arith.constant 17 : index
    %17 = memref.load %arg0[%c17] : memref<38xf32, #tpu.memory_space<smem>>
    %c18 = arith.constant 18 : index
    %18 = memref.load %arg0[%c18] : memref<38xf32, #tpu.memory_space<smem>>
    %c19 = arith.constant 19 : index
    %19 = memref.load %arg0[%c19] : memref<38xf32, #tpu.memory_space<smem>>
    %c20 = arith.constant 20 : index
    %20 = memref.load %arg0[%c20] : memref<38xf32, #tpu.memory_space<smem>>
    %c21 = arith.constant 21 : index
    %21 = memref.load %arg0[%c21] : memref<38xf32, #tpu.memory_space<smem>>
    %c22 = arith.constant 22 : index
    %22 = memref.load %arg0[%c22] : memref<38xf32, #tpu.memory_space<smem>>
    %c23 = arith.constant 23 : index
    %23 = memref.load %arg0[%c23] : memref<38xf32, #tpu.memory_space<smem>>
    %c24 = arith.constant 24 : index
    %24 = memref.load %arg0[%c24] : memref<38xf32, #tpu.memory_space<smem>>
    %c25 = arith.constant 25 : index
    %25 = memref.load %arg0[%c25] : memref<38xf32, #tpu.memory_space<smem>>
    %c26 = arith.constant 26 : index
    %26 = memref.load %arg0[%c26] : memref<38xf32, #tpu.memory_space<smem>>
    %c27 = arith.constant 27 : index
    %27 = memref.load %arg0[%c27] : memref<38xf32, #tpu.memory_space<smem>>
    %c28 = arith.constant 28 : index
    %28 = memref.load %arg0[%c28] : memref<38xf32, #tpu.memory_space<smem>>
    %c29 = arith.constant 29 : index
    %29 = memref.load %arg0[%c29] : memref<38xf32, #tpu.memory_space<smem>>
    %c30 = arith.constant 30 : index
    %30 = memref.load %arg0[%c30] : memref<38xf32, #tpu.memory_space<smem>>
    %c31 = arith.constant 31 : index
    %31 = memref.load %arg0[%c31] : memref<38xf32, #tpu.memory_space<smem>>
    %c32 = arith.constant 32 : index
    %32 = memref.load %arg0[%c32] : memref<38xf32, #tpu.memory_space<smem>>
    %c33 = arith.constant 33 : index
    %33 = memref.load %arg0[%c33] : memref<38xf32, #tpu.memory_space<smem>>
    %c34 = arith.constant 34 : index
    %34 = memref.load %arg0[%c34] : memref<38xf32, #tpu.memory_space<smem>>
    %c35 = arith.constant 35 : index
    %35 = memref.load %arg0[%c35] : memref<38xf32, #tpu.memory_space<smem>>
    %c36 = arith.constant 36 : index
    %36 = memref.load %arg0[%c36] : memref<38xf32, #tpu.memory_space<smem>>
    %c37 = arith.constant 37 : index
    %37 = memref.load %arg0[%c37] : memref<38xf32, #tpu.memory_space<smem>>
    %38 = arith.mulf %0, %0 : f32
    %39 = arith.mulf %1, %1 : f32
    %40 = arith.addf %38, %39 : f32
    %41 = arith.mulf %2, %2 : f32
    %42 = arith.addf %40, %41 : f32
    %cst = arith.constant 1.000000e+00 : f32
    %43 = arith.mulf %cst, %42 : f32
    %cst_0 = arith.constant -0.166666672 : f32
    %44 = arith.mulf %43, %cst_0 : f32
    %cst_1 = arith.constant 1.000000e+00 : f32
    %45 = arith.addf %cst_1, %44 : f32
    %cst_2 = arith.constant -0.0416666679 : f32
    %46 = arith.mulf %43, %cst_2 : f32
    %cst_3 = arith.constant 5.000000e-01 : f32
    %47 = arith.addf %cst_3, %46 : f32
    %cst_4 = arith.constant -0.00833333377 : f32
    %48 = arith.mulf %43, %cst_4 : f32
    %cst_5 = arith.constant 0.166666672 : f32
    %49 = arith.addf %cst_5, %48 : f32
    %50 = arith.mulf %43, %42 : f32
    %cst_6 = arith.constant 0.00833333377 : f32
    %51 = arith.mulf %50, %cst_6 : f32
    %52 = arith.addf %45, %51 : f32
    %cst_7 = arith.constant 0.00138888892 : f32
    %53 = arith.mulf %50, %cst_7 : f32
    %54 = arith.addf %47, %53 : f32
    %cst_8 = arith.constant 1.98412701E-4 : f32
    %55 = arith.mulf %50, %cst_8 : f32
    %56 = arith.addf %49, %55 : f32
    %57 = arith.mulf %50, %42 : f32
    %cst_9 = arith.constant -1.98412701E-4 : f32
    %58 = arith.mulf %57, %cst_9 : f32
    %59 = arith.addf %52, %58 : f32
    %cst_10 = arith.constant -2.48015876E-5 : f32
    %60 = arith.mulf %57, %cst_10 : f32
    %61 = arith.addf %54, %60 : f32
    %cst_11 = arith.constant -2.75573188E-6 : f32
    %62 = arith.mulf %57, %cst_11 : f32
    %63 = arith.addf %56, %62 : f32
    %64 = arith.mulf %57, %42 : f32
    %cst_12 = arith.constant 2.75573188E-6 : f32
    %65 = arith.mulf %64, %cst_12 : f32
    %66 = arith.addf %59, %65 : f32
    %cst_13 = arith.constant 2.755732E-7 : f32
    %67 = arith.mulf %64, %cst_13 : f32
    %68 = arith.addf %61, %67 : f32
    %cst_14 = arith.constant 2.50521079E-8 : f32
    %69 = arith.mulf %64, %cst_14 : f32
    %70 = arith.addf %63, %69 : f32
    %71 = arith.mulf %64, %42 : f32
    %cst_15 = arith.constant -2.50521079E-8 : f32
    %72 = arith.mulf %71, %cst_15 : f32
    %73 = arith.addf %66, %72 : f32
    %cst_16 = arith.constant -2.08767559E-9 : f32
    %74 = arith.mulf %71, %cst_16 : f32
    %75 = arith.addf %68, %74 : f32
    %cst_17 = arith.constant -1.60590444E-10 : f32
    %76 = arith.mulf %71, %cst_17 : f32
    %77 = arith.addf %70, %76 : f32
    %78 = arith.mulf %71, %42 : f32
    %cst_18 = arith.constant 1.60590444E-10 : f32
    %79 = arith.mulf %78, %cst_18 : f32
    %80 = arith.addf %73, %79 : f32
    %cst_19 = arith.constant 1.14707454E-11 : f32
    %81 = arith.mulf %78, %cst_19 : f32
    %82 = arith.addf %75, %81 : f32
    %cst_20 = arith.constant 7.6471636E-13 : f32
    %83 = arith.mulf %78, %cst_20 : f32
    %84 = arith.addf %77, %83 : f32
    %85 = arith.mulf %78, %42 : f32
    %cst_21 = arith.constant -7.6471636E-13 : f32
    %86 = arith.mulf %85, %cst_21 : f32
    %87 = arith.addf %80, %86 : f32
    %cst_22 = arith.constant -4.77947726E-14 : f32
    %88 = arith.mulf %85, %cst_22 : f32
    %89 = arith.addf %82, %88 : f32
    %cst_23 = arith.constant -2.81145736E-15 : f32
    %90 = arith.mulf %85, %cst_23 : f32
    %91 = arith.addf %84, %90 : f32
    %92 = arith.mulf %85, %42 : f32
    %cst_24 = arith.constant 2.81145736E-15 : f32
    %93 = arith.mulf %92, %cst_24 : f32
    %94 = arith.addf %87, %93 : f32
    %cst_25 = arith.constant 1.56192068E-16 : f32
    %95 = arith.mulf %92, %cst_25 : f32
    %96 = arith.addf %89, %95 : f32
    %cst_26 = arith.constant 8.22063508E-18 : f32
    %97 = arith.mulf %92, %cst_26 : f32
    %98 = arith.addf %91, %97 : f32
    %99 = arith.mulf %92, %42 : f32
    %cst_27 = arith.constant -8.22063508E-18 : f32
    %100 = arith.mulf %99, %cst_27 : f32
    %101 = arith.addf %94, %100 : f32
    %cst_28 = arith.constant -4.11031759E-19 : f32
    %102 = arith.mulf %99, %cst_28 : f32
    %103 = arith.addf %96, %102 : f32
    %cst_29 = arith.constant -1.95729415E-20 : f32
    %104 = arith.mulf %99, %cst_29 : f32
    %105 = arith.addf %98, %104 : f32
    %106 = arith.mulf %99, %42 : f32
    %cst_30 = arith.constant 1.95729415E-20 : f32
    %107 = arith.mulf %106, %cst_30 : f32
    %108 = arith.addf %101, %107 : f32
    %cst_31 = arith.constant 8.89679095E-22 : f32
    %109 = arith.mulf %106, %cst_31 : f32
    %110 = arith.addf %103, %109 : f32
    %cst_32 = arith.constant 3.8681703E-23 : f32
    %111 = arith.mulf %106, %cst_32 : f32
    %112 = arith.addf %105, %111 : f32
    %cst_33 = arith.constant 0.000000e+00 : f32
    %113 = arith.subf %cst_33, %2 : f32
    %cst_34 = arith.constant 0.000000e+00 : f32
    %114 = arith.subf %cst_34, %0 : f32
    %cst_35 = arith.constant 0.000000e+00 : f32
    %115 = arith.subf %cst_35, %1 : f32
    %116 = arith.mulf %113, %2 : f32
    %cst_36 = arith.constant 0.000000e+00 : f32
    %117 = arith.addf %cst_36, %116 : f32
    %118 = arith.mulf %1, %115 : f32
    %119 = arith.addf %117, %118 : f32
    %cst_37 = arith.constant 0.000000e+00 : f32
    %120 = arith.mulf %cst_37, %113 : f32
    %cst_38 = arith.constant 0.000000e+00 : f32
    %121 = arith.addf %cst_38, %120 : f32
    %cst_39 = arith.constant 0.000000e+00 : f32
    %122 = arith.mulf %113, %cst_39 : f32
    %123 = arith.addf %121, %122 : f32
    %124 = arith.mulf %1, %0 : f32
    %125 = arith.addf %123, %124 : f32
    %cst_40 = arith.constant 0.000000e+00 : f32
    %126 = arith.mulf %cst_40, %1 : f32
    %cst_41 = arith.constant 0.000000e+00 : f32
    %127 = arith.addf %cst_41, %126 : f32
    %128 = arith.mulf %113, %114 : f32
    %129 = arith.addf %127, %128 : f32
    %cst_42 = arith.constant 0.000000e+00 : f32
    %130 = arith.mulf %1, %cst_42 : f32
    %131 = arith.addf %129, %130 : f32
    %cst_43 = arith.constant 0.000000e+00 : f32
    %132 = arith.mulf %2, %cst_43 : f32
    %cst_44 = arith.constant 0.000000e+00 : f32
    %133 = arith.addf %cst_44, %132 : f32
    %cst_45 = arith.constant 0.000000e+00 : f32
    %134 = arith.mulf %cst_45, %2 : f32
    %135 = arith.addf %133, %134 : f32
    %136 = arith.mulf %114, %115 : f32
    %137 = arith.addf %135, %136 : f32
    %138 = arith.mulf %2, %113 : f32
    %cst_46 = arith.constant 0.000000e+00 : f32
    %139 = arith.addf %cst_46, %138 : f32
    %cst_47 = arith.constant 0.000000e+00 : f32
    %140 = arith.addf %139, %cst_47 : f32
    %141 = arith.mulf %114, %0 : f32
    %142 = arith.addf %140, %141 : f32
    %143 = arith.mulf %2, %1 : f32
    %cst_48 = arith.constant 0.000000e+00 : f32
    %144 = arith.addf %cst_48, %143 : f32
    %cst_49 = arith.constant 0.000000e+00 : f32
    %145 = arith.mulf %cst_49, %114 : f32
    %146 = arith.addf %144, %145 : f32
    %cst_50 = arith.constant 0.000000e+00 : f32
    %147 = arith.mulf %114, %cst_50 : f32
    %148 = arith.addf %146, %147 : f32
    %cst_51 = arith.constant 0.000000e+00 : f32
    %149 = arith.mulf %115, %cst_51 : f32
    %cst_52 = arith.constant 0.000000e+00 : f32
    %150 = arith.addf %cst_52, %149 : f32
    %151 = arith.mulf %0, %2 : f32
    %152 = arith.addf %150, %151 : f32
    %cst_53 = arith.constant 0.000000e+00 : f32
    %153 = arith.mulf %cst_53, %115 : f32
    %154 = arith.addf %152, %153 : f32
    %155 = arith.mulf %115, %113 : f32
    %cst_54 = arith.constant 0.000000e+00 : f32
    %156 = arith.addf %cst_54, %155 : f32
    %cst_55 = arith.constant 0.000000e+00 : f32
    %157 = arith.mulf %0, %cst_55 : f32
    %158 = arith.addf %156, %157 : f32
    %cst_56 = arith.constant 0.000000e+00 : f32
    %159 = arith.mulf %cst_56, %0 : f32
    %160 = arith.addf %158, %159 : f32
    %161 = arith.mulf %115, %1 : f32
    %cst_57 = arith.constant 0.000000e+00 : f32
    %162 = arith.addf %cst_57, %161 : f32
    %163 = arith.mulf %0, %114 : f32
    %164 = arith.addf %162, %163 : f32
    %cst_58 = arith.constant 0.000000e+00 : f32
    %165 = arith.addf %164, %cst_58 : f32
    %cst_59 = arith.constant 0.000000e+00 : f32
    %166 = arith.mulf %108, %cst_59 : f32
    %cst_60 = arith.constant 1.000000e+00 : f32
    %167 = arith.addf %cst_60, %166 : f32
    %168 = arith.mulf %110, %119 : f32
    %169 = arith.addf %167, %168 : f32
    %170 = arith.mulf %108, %113 : f32
    %cst_61 = arith.constant 0.000000e+00 : f32
    %171 = arith.addf %cst_61, %170 : f32
    %172 = arith.mulf %110, %125 : f32
    %173 = arith.addf %171, %172 : f32
    %174 = arith.mulf %108, %1 : f32
    %cst_62 = arith.constant 0.000000e+00 : f32
    %175 = arith.addf %cst_62, %174 : f32
    %176 = arith.mulf %110, %131 : f32
    %177 = arith.addf %175, %176 : f32
    %178 = arith.mulf %108, %2 : f32
    %cst_63 = arith.constant 0.000000e+00 : f32
    %179 = arith.addf %cst_63, %178 : f32
    %180 = arith.mulf %110, %137 : f32
    %181 = arith.addf %179, %180 : f32
    %cst_64 = arith.constant 0.000000e+00 : f32
    %182 = arith.mulf %108, %cst_64 : f32
    %cst_65 = arith.constant 1.000000e+00 : f32
    %183 = arith.addf %cst_65, %182 : f32
    %184 = arith.mulf %110, %142 : f32
    %185 = arith.addf %183, %184 : f32
    %186 = arith.mulf %108, %114 : f32
    %cst_66 = arith.constant 0.000000e+00 : f32
    %187 = arith.addf %cst_66, %186 : f32
    %188 = arith.mulf %110, %148 : f32
    %189 = arith.addf %187, %188 : f32
    %190 = arith.mulf %108, %115 : f32
    %cst_67 = arith.constant 0.000000e+00 : f32
    %191 = arith.addf %cst_67, %190 : f32
    %192 = arith.mulf %110, %154 : f32
    %193 = arith.addf %191, %192 : f32
    %194 = arith.mulf %108, %0 : f32
    %cst_68 = arith.constant 0.000000e+00 : f32
    %195 = arith.addf %cst_68, %194 : f32
    %196 = arith.mulf %110, %160 : f32
    %197 = arith.addf %195, %196 : f32
    %cst_69 = arith.constant 0.000000e+00 : f32
    %198 = arith.mulf %108, %cst_69 : f32
    %cst_70 = arith.constant 1.000000e+00 : f32
    %199 = arith.addf %cst_70, %198 : f32
    %200 = arith.mulf %110, %165 : f32
    %201 = arith.addf %199, %200 : f32
    %cst_71 = arith.constant 0.000000e+00 : f32
    %202 = arith.mulf %110, %cst_71 : f32
    %cst_72 = arith.constant 1.000000e+00 : f32
    %203 = arith.addf %cst_72, %202 : f32
    %204 = arith.mulf %112, %119 : f32
    %205 = arith.addf %203, %204 : f32
    %206 = arith.mulf %110, %113 : f32
    %cst_73 = arith.constant 0.000000e+00 : f32
    %207 = arith.addf %cst_73, %206 : f32
    %208 = arith.mulf %112, %125 : f32
    %209 = arith.addf %207, %208 : f32
    %210 = arith.mulf %110, %1 : f32
    %cst_74 = arith.constant 0.000000e+00 : f32
    %211 = arith.addf %cst_74, %210 : f32
    %212 = arith.mulf %112, %131 : f32
    %213 = arith.addf %211, %212 : f32
    %214 = arith.mulf %110, %2 : f32
    %cst_75 = arith.constant 0.000000e+00 : f32
    %215 = arith.addf %cst_75, %214 : f32
    %216 = arith.mulf %112, %137 : f32
    %217 = arith.addf %215, %216 : f32
    %cst_76 = arith.constant 0.000000e+00 : f32
    %218 = arith.mulf %110, %cst_76 : f32
    %cst_77 = arith.constant 1.000000e+00 : f32
    %219 = arith.addf %cst_77, %218 : f32
    %220 = arith.mulf %112, %142 : f32
    %221 = arith.addf %219, %220 : f32
    %222 = arith.mulf %110, %114 : f32
    %cst_78 = arith.constant 0.000000e+00 : f32
    %223 = arith.addf %cst_78, %222 : f32
    %224 = arith.mulf %112, %148 : f32
    %225 = arith.addf %223, %224 : f32
    %226 = arith.mulf %110, %115 : f32
    %cst_79 = arith.constant 0.000000e+00 : f32
    %227 = arith.addf %cst_79, %226 : f32
    %228 = arith.mulf %112, %154 : f32
    %229 = arith.addf %227, %228 : f32
    %230 = arith.mulf %110, %0 : f32
    %cst_80 = arith.constant 0.000000e+00 : f32
    %231 = arith.addf %cst_80, %230 : f32
    %232 = arith.mulf %112, %160 : f32
    %233 = arith.addf %231, %232 : f32
    %cst_81 = arith.constant 0.000000e+00 : f32
    %234 = arith.mulf %110, %cst_81 : f32
    %cst_82 = arith.constant 1.000000e+00 : f32
    %235 = arith.addf %cst_82, %234 : f32
    %236 = arith.mulf %112, %165 : f32
    %237 = arith.addf %235, %236 : f32
    %238 = arith.mulf %205, %3 : f32
    %cst_83 = arith.constant 0.000000e+00 : f32
    %239 = arith.addf %cst_83, %238 : f32
    %240 = arith.mulf %209, %4 : f32
    %241 = arith.addf %239, %240 : f32
    %242 = arith.mulf %213, %5 : f32
    %243 = arith.addf %241, %242 : f32
    %244 = arith.mulf %217, %3 : f32
    %cst_84 = arith.constant 0.000000e+00 : f32
    %245 = arith.addf %cst_84, %244 : f32
    %246 = arith.mulf %221, %4 : f32
    %247 = arith.addf %245, %246 : f32
    %248 = arith.mulf %225, %5 : f32
    %249 = arith.addf %247, %248 : f32
    %250 = arith.mulf %229, %3 : f32
    %cst_85 = arith.constant 0.000000e+00 : f32
    %251 = arith.addf %cst_85, %250 : f32
    %252 = arith.mulf %233, %4 : f32
    %253 = arith.addf %251, %252 : f32
    %254 = arith.mulf %237, %5 : f32
    %255 = arith.addf %253, %254 : f32
    %256 = arith.mulf %169, %243 : f32
    %cst_86 = arith.constant 0.000000e+00 : f32
    %257 = arith.addf %cst_86, %256 : f32
    %258 = arith.mulf %181, %249 : f32
    %259 = arith.addf %257, %258 : f32
    %260 = arith.mulf %193, %255 : f32
    %261 = arith.addf %259, %260 : f32
    %262 = arith.mulf %173, %243 : f32
    %cst_87 = arith.constant 0.000000e+00 : f32
    %263 = arith.addf %cst_87, %262 : f32
    %264 = arith.mulf %185, %249 : f32
    %265 = arith.addf %263, %264 : f32
    %266 = arith.mulf %197, %255 : f32
    %267 = arith.addf %265, %266 : f32
    %268 = arith.mulf %177, %243 : f32
    %cst_88 = arith.constant 0.000000e+00 : f32
    %269 = arith.addf %cst_88, %268 : f32
    %270 = arith.mulf %189, %249 : f32
    %271 = arith.addf %269, %270 : f32
    %272 = arith.mulf %201, %255 : f32
    %273 = arith.addf %271, %272 : f32
    %274 = arith.mulf %6, %169 : f32
    %cst_89 = arith.constant 0.000000e+00 : f32
    %275 = arith.addf %cst_89, %274 : f32
    %276 = arith.mulf %7, %173 : f32
    %277 = arith.addf %275, %276 : f32
    %278 = arith.mulf %8, %177 : f32
    %279 = arith.addf %277, %278 : f32
    %280 = arith.mulf %6, %181 : f32
    %cst_90 = arith.constant 0.000000e+00 : f32
    %281 = arith.addf %cst_90, %280 : f32
    %282 = arith.mulf %7, %185 : f32
    %283 = arith.addf %281, %282 : f32
    %284 = arith.mulf %8, %189 : f32
    %285 = arith.addf %283, %284 : f32
    %286 = arith.mulf %6, %193 : f32
    %cst_91 = arith.constant 0.000000e+00 : f32
    %287 = arith.addf %cst_91, %286 : f32
    %288 = arith.mulf %7, %197 : f32
    %289 = arith.addf %287, %288 : f32
    %290 = arith.mulf %8, %201 : f32
    %291 = arith.addf %289, %290 : f32
    %292 = arith.mulf %6, %261 : f32
    %cst_92 = arith.constant 0.000000e+00 : f32
    %293 = arith.addf %cst_92, %292 : f32
    %294 = arith.mulf %7, %267 : f32
    %295 = arith.addf %293, %294 : f32
    %296 = arith.mulf %8, %273 : f32
    %297 = arith.addf %295, %296 : f32
    %298 = arith.subf %9, %297 : f32
    %299 = arith.mulf %10, %169 : f32
    %cst_93 = arith.constant 0.000000e+00 : f32
    %300 = arith.addf %cst_93, %299 : f32
    %301 = arith.mulf %11, %173 : f32
    %302 = arith.addf %300, %301 : f32
    %303 = arith.mulf %12, %177 : f32
    %304 = arith.addf %302, %303 : f32
    %305 = arith.mulf %10, %181 : f32
    %cst_94 = arith.constant 0.000000e+00 : f32
    %306 = arith.addf %cst_94, %305 : f32
    %307 = arith.mulf %11, %185 : f32
    %308 = arith.addf %306, %307 : f32
    %309 = arith.mulf %12, %189 : f32
    %310 = arith.addf %308, %309 : f32
    %311 = arith.mulf %10, %193 : f32
    %cst_95 = arith.constant 0.000000e+00 : f32
    %312 = arith.addf %cst_95, %311 : f32
    %313 = arith.mulf %11, %197 : f32
    %314 = arith.addf %312, %313 : f32
    %315 = arith.mulf %12, %201 : f32
    %316 = arith.addf %314, %315 : f32
    %317 = arith.mulf %10, %261 : f32
    %cst_96 = arith.constant 0.000000e+00 : f32
    %318 = arith.addf %cst_96, %317 : f32
    %319 = arith.mulf %11, %267 : f32
    %320 = arith.addf %318, %319 : f32
    %321 = arith.mulf %12, %273 : f32
    %322 = arith.addf %320, %321 : f32
    %323 = arith.subf %13, %322 : f32
    %324 = arith.mulf %14, %169 : f32
    %cst_97 = arith.constant 0.000000e+00 : f32
    %325 = arith.addf %cst_97, %324 : f32
    %326 = arith.mulf %15, %173 : f32
    %327 = arith.addf %325, %326 : f32
    %328 = arith.mulf %16, %177 : f32
    %329 = arith.addf %327, %328 : f32
    %330 = arith.mulf %14, %181 : f32
    %cst_98 = arith.constant 0.000000e+00 : f32
    %331 = arith.addf %cst_98, %330 : f32
    %332 = arith.mulf %15, %185 : f32
    %333 = arith.addf %331, %332 : f32
    %334 = arith.mulf %16, %189 : f32
    %335 = arith.addf %333, %334 : f32
    %336 = arith.mulf %14, %193 : f32
    %cst_99 = arith.constant 0.000000e+00 : f32
    %337 = arith.addf %cst_99, %336 : f32
    %338 = arith.mulf %15, %197 : f32
    %339 = arith.addf %337, %338 : f32
    %340 = arith.mulf %16, %201 : f32
    %341 = arith.addf %339, %340 : f32
    %342 = arith.mulf %14, %261 : f32
    %cst_100 = arith.constant 0.000000e+00 : f32
    %343 = arith.addf %cst_100, %342 : f32
    %344 = arith.mulf %15, %267 : f32
    %345 = arith.addf %343, %344 : f32
    %346 = arith.mulf %16, %273 : f32
    %347 = arith.addf %345, %346 : f32
    %348 = arith.subf %17, %347 : f32
    %349 = arith.mulf %18, %169 : f32
    %cst_101 = arith.constant 0.000000e+00 : f32
    %350 = arith.addf %cst_101, %349 : f32
    %351 = arith.mulf %19, %173 : f32
    %352 = arith.addf %350, %351 : f32
    %353 = arith.mulf %20, %177 : f32
    %354 = arith.addf %352, %353 : f32
    %355 = arith.mulf %18, %181 : f32
    %cst_102 = arith.constant 0.000000e+00 : f32
    %356 = arith.addf %cst_102, %355 : f32
    %357 = arith.mulf %19, %185 : f32
    %358 = arith.addf %356, %357 : f32
    %359 = arith.mulf %20, %189 : f32
    %360 = arith.addf %358, %359 : f32
    %361 = arith.mulf %18, %193 : f32
    %cst_103 = arith.constant 0.000000e+00 : f32
    %362 = arith.addf %cst_103, %361 : f32
    %363 = arith.mulf %19, %197 : f32
    %364 = arith.addf %362, %363 : f32
    %365 = arith.mulf %20, %201 : f32
    %366 = arith.addf %364, %365 : f32
    %367 = arith.mulf %18, %261 : f32
    %cst_104 = arith.constant 0.000000e+00 : f32
    %368 = arith.addf %cst_104, %367 : f32
    %369 = arith.mulf %19, %267 : f32
    %370 = arith.addf %368, %369 : f32
    %371 = arith.mulf %20, %273 : f32
    %372 = arith.addf %370, %371 : f32
    %373 = arith.subf %21, %372 : f32
    %374 = arith.mulf %279, %22 : f32
    %cst_105 = arith.constant 0.000000e+00 : f32
    %375 = arith.addf %cst_105, %374 : f32
    %376 = arith.mulf %304, %26 : f32
    %377 = arith.addf %375, %376 : f32
    %378 = arith.mulf %329, %30 : f32
    %379 = arith.addf %377, %378 : f32
    %380 = arith.mulf %354, %34 : f32
    %381 = arith.addf %379, %380 : f32
    %382 = arith.mulf %279, %23 : f32
    %cst_106 = arith.constant 0.000000e+00 : f32
    %383 = arith.addf %cst_106, %382 : f32
    %384 = arith.mulf %304, %27 : f32
    %385 = arith.addf %383, %384 : f32
    %386 = arith.mulf %329, %31 : f32
    %387 = arith.addf %385, %386 : f32
    %388 = arith.mulf %354, %35 : f32
    %389 = arith.addf %387, %388 : f32
    %390 = arith.mulf %279, %24 : f32
    %cst_107 = arith.constant 0.000000e+00 : f32
    %391 = arith.addf %cst_107, %390 : f32
    %392 = arith.mulf %304, %28 : f32
    %393 = arith.addf %391, %392 : f32
    %394 = arith.mulf %329, %32 : f32
    %395 = arith.addf %393, %394 : f32
    %396 = arith.mulf %354, %36 : f32
    %397 = arith.addf %395, %396 : f32
    %398 = arith.mulf %279, %25 : f32
    %cst_108 = arith.constant 0.000000e+00 : f32
    %399 = arith.addf %cst_108, %398 : f32
    %400 = arith.mulf %304, %29 : f32
    %401 = arith.addf %399, %400 : f32
    %402 = arith.mulf %329, %33 : f32
    %403 = arith.addf %401, %402 : f32
    %404 = arith.mulf %354, %37 : f32
    %405 = arith.addf %403, %404 : f32
    %406 = arith.mulf %285, %22 : f32
    %cst_109 = arith.constant 0.000000e+00 : f32
    %407 = arith.addf %cst_109, %406 : f32
    %408 = arith.mulf %310, %26 : f32
    %409 = arith.addf %407, %408 : f32
    %410 = arith.mulf %335, %30 : f32
    %411 = arith.addf %409, %410 : f32
    %412 = arith.mulf %360, %34 : f32
    %413 = arith.addf %411, %412 : f32
    %414 = arith.mulf %285, %23 : f32
    %cst_110 = arith.constant 0.000000e+00 : f32
    %415 = arith.addf %cst_110, %414 : f32
    %416 = arith.mulf %310, %27 : f32
    %417 = arith.addf %415, %416 : f32
    %418 = arith.mulf %335, %31 : f32
    %419 = arith.addf %417, %418 : f32
    %420 = arith.mulf %360, %35 : f32
    %421 = arith.addf %419, %420 : f32
    %422 = arith.mulf %285, %24 : f32
    %cst_111 = arith.constant 0.000000e+00 : f32
    %423 = arith.addf %cst_111, %422 : f32
    %424 = arith.mulf %310, %28 : f32
    %425 = arith.addf %423, %424 : f32
    %426 = arith.mulf %335, %32 : f32
    %427 = arith.addf %425, %426 : f32
    %428 = arith.mulf %360, %36 : f32
    %429 = arith.addf %427, %428 : f32
    %430 = arith.mulf %285, %25 : f32
    %cst_112 = arith.constant 0.000000e+00 : f32
    %431 = arith.addf %cst_112, %430 : f32
    %432 = arith.mulf %310, %29 : f32
    %433 = arith.addf %431, %432 : f32
    %434 = arith.mulf %335, %33 : f32
    %435 = arith.addf %433, %434 : f32
    %436 = arith.mulf %360, %37 : f32
    %437 = arith.addf %435, %436 : f32
    %438 = arith.mulf %291, %22 : f32
    %cst_113 = arith.constant 0.000000e+00 : f32
    %439 = arith.addf %cst_113, %438 : f32
    %440 = arith.mulf %316, %26 : f32
    %441 = arith.addf %439, %440 : f32
    %442 = arith.mulf %341, %30 : f32
    %443 = arith.addf %441, %442 : f32
    %444 = arith.mulf %366, %34 : f32
    %445 = arith.addf %443, %444 : f32
    %446 = arith.mulf %291, %23 : f32
    %cst_114 = arith.constant 0.000000e+00 : f32
    %447 = arith.addf %cst_114, %446 : f32
    %448 = arith.mulf %316, %27 : f32
    %449 = arith.addf %447, %448 : f32
    %450 = arith.mulf %341, %31 : f32
    %451 = arith.addf %449, %450 : f32
    %452 = arith.mulf %366, %35 : f32
    %453 = arith.addf %451, %452 : f32
    %454 = arith.mulf %291, %24 : f32
    %cst_115 = arith.constant 0.000000e+00 : f32
    %455 = arith.addf %cst_115, %454 : f32
    %456 = arith.mulf %316, %28 : f32
    %457 = arith.addf %455, %456 : f32
    %458 = arith.mulf %341, %32 : f32
    %459 = arith.addf %457, %458 : f32
    %460 = arith.mulf %366, %36 : f32
    %461 = arith.addf %459, %460 : f32
    %462 = arith.mulf %291, %25 : f32
    %cst_116 = arith.constant 0.000000e+00 : f32
    %463 = arith.addf %cst_116, %462 : f32
    %464 = arith.mulf %316, %29 : f32
    %465 = arith.addf %463, %464 : f32
    %466 = arith.mulf %341, %33 : f32
    %467 = arith.addf %465, %466 : f32
    %468 = arith.mulf %366, %37 : f32
    %469 = arith.addf %467, %468 : f32
    %470 = arith.mulf %298, %22 : f32
    %cst_117 = arith.constant 0.000000e+00 : f32
    %471 = arith.addf %cst_117, %470 : f32
    %472 = arith.mulf %323, %26 : f32
    %473 = arith.addf %471, %472 : f32
    %474 = arith.mulf %348, %30 : f32
    %475 = arith.addf %473, %474 : f32
    %476 = arith.mulf %373, %34 : f32
    %477 = arith.addf %475, %476 : f32
    %478 = arith.mulf %298, %23 : f32
    %cst_118 = arith.constant 0.000000e+00 : f32
    %479 = arith.addf %cst_118, %478 : f32
    %480 = arith.mulf %323, %27 : f32
    %481 = arith.addf %479, %480 : f32
    %482 = arith.mulf %348, %31 : f32
    %483 = arith.addf %481, %482 : f32
    %484 = arith.mulf %373, %35 : f32
    %485 = arith.addf %483, %484 : f32
    %486 = arith.mulf %298, %24 : f32
    %cst_119 = arith.constant 0.000000e+00 : f32
    %487 = arith.addf %cst_119, %486 : f32
    %488 = arith.mulf %323, %28 : f32
    %489 = arith.addf %487, %488 : f32
    %490 = arith.mulf %348, %32 : f32
    %491 = arith.addf %489, %490 : f32
    %492 = arith.mulf %373, %36 : f32
    %493 = arith.addf %491, %492 : f32
    %494 = arith.mulf %298, %25 : f32
    %cst_120 = arith.constant 0.000000e+00 : f32
    %495 = arith.addf %cst_120, %494 : f32
    %496 = arith.mulf %323, %29 : f32
    %497 = arith.addf %495, %496 : f32
    %498 = arith.mulf %348, %33 : f32
    %499 = arith.addf %497, %498 : f32
    %500 = arith.mulf %373, %37 : f32
    %501 = arith.addf %499, %500 : f32
    %502 = arith.mulf %12, %17 : f32
    %503 = arith.mulf %16, %13 : f32
    %504 = arith.subf %502, %503 : f32
    %505 = arith.mulf %7, %504 : f32
    %506 = arith.mulf %11, %17 : f32
    %507 = arith.mulf %15, %13 : f32
    %508 = arith.subf %506, %507 : f32
    %509 = arith.mulf %8, %508 : f32
    %510 = arith.subf %505, %509 : f32
    %511 = arith.mulf %11, %16 : f32
    %512 = arith.mulf %15, %12 : f32
    %513 = arith.subf %511, %512 : f32
    %514 = arith.mulf %9, %513 : f32
    %515 = arith.addf %510, %514 : f32
    %516 = arith.mulf %12, %17 : f32
    %517 = arith.mulf %16, %13 : f32
    %518 = arith.subf %516, %517 : f32
    %519 = arith.mulf %6, %518 : f32
    %520 = arith.mulf %10, %17 : f32
    %521 = arith.mulf %14, %13 : f32
    %522 = arith.subf %520, %521 : f32
    %523 = arith.mulf %8, %522 : f32
    %524 = arith.subf %519, %523 : f32
    %525 = arith.mulf %10, %16 : f32
    %526 = arith.mulf %14, %12 : f32
    %527 = arith.subf %525, %526 : f32
    %528 = arith.mulf %9, %527 : f32
    %529 = arith.addf %524, %528 : f32
    %530 = arith.mulf %11, %17 : f32
    %531 = arith.mulf %15, %13 : f32
    %532 = arith.subf %530, %531 : f32
    %533 = arith.mulf %6, %532 : f32
    %534 = arith.mulf %10, %17 : f32
    %535 = arith.mulf %14, %13 : f32
    %536 = arith.subf %534, %535 : f32
    %537 = arith.mulf %7, %536 : f32
    %538 = arith.subf %533, %537 : f32
    %539 = arith.mulf %10, %15 : f32
    %540 = arith.mulf %14, %11 : f32
    %541 = arith.subf %539, %540 : f32
    %542 = arith.mulf %9, %541 : f32
    %543 = arith.addf %538, %542 : f32
    %544 = arith.mulf %11, %16 : f32
    %545 = arith.mulf %15, %12 : f32
    %546 = arith.subf %544, %545 : f32
    %547 = arith.mulf %6, %546 : f32
    %548 = arith.mulf %10, %16 : f32
    %549 = arith.mulf %14, %12 : f32
    %550 = arith.subf %548, %549 : f32
    %551 = arith.mulf %7, %550 : f32
    %552 = arith.subf %547, %551 : f32
    %553 = arith.mulf %10, %15 : f32
    %554 = arith.mulf %14, %11 : f32
    %555 = arith.subf %553, %554 : f32
    %556 = arith.mulf %8, %555 : f32
    %557 = arith.addf %552, %556 : f32
    %cst_121 = arith.constant 0.000000e+00 : f32
    %558 = arith.subf %cst_121, %515 : f32
    %cst_122 = arith.constant 0.000000e+00 : f32
    %559 = arith.subf %cst_122, %543 : f32
    %560 = arith.mulf %18, %558 : f32
    %cst_123 = arith.constant 0.000000e+00 : f32
    %561 = arith.addf %cst_123, %560 : f32
    %562 = arith.mulf %19, %529 : f32
    %563 = arith.addf %561, %562 : f32
    %564 = arith.mulf %20, %559 : f32
    %565 = arith.addf %563, %564 : f32
    %566 = arith.mulf %21, %557 : f32
    %567 = arith.addf %565, %566 : f32
    %cst_124 = arith.constant 1.000000e+00 : f32
    %568 = arith.divf %cst_124, %567 : f32
    %569 = arith.mulf %558, %568 : f32
    %570 = arith.mulf %529, %568 : f32
    %571 = arith.mulf %559, %568 : f32
    %572 = arith.mulf %557, %568 : f32
    %573 = arith.mulf %169, %569 : f32
    %cst_125 = arith.constant 0.000000e+00 : f32
    %574 = arith.addf %cst_125, %573 : f32
    %575 = arith.mulf %173, %570 : f32
    %576 = arith.addf %574, %575 : f32
    %577 = arith.mulf %177, %571 : f32
    %578 = arith.addf %576, %577 : f32
    %579 = arith.mulf %243, %572 : f32
    %580 = arith.addf %578, %579 : f32
    %581 = arith.mulf %181, %569 : f32
    %cst_126 = arith.constant 0.000000e+00 : f32
    %582 = arith.addf %cst_126, %581 : f32
    %583 = arith.mulf %185, %570 : f32
    %584 = arith.addf %582, %583 : f32
    %585 = arith.mulf %189, %571 : f32
    %586 = arith.addf %584, %585 : f32
    %587 = arith.mulf %249, %572 : f32
    %588 = arith.addf %586, %587 : f32
    %589 = arith.mulf %193, %569 : f32
    %cst_127 = arith.constant 0.000000e+00 : f32
    %590 = arith.addf %cst_127, %589 : f32
    %591 = arith.mulf %197, %570 : f32
    %592 = arith.addf %590, %591 : f32
    %593 = arith.mulf %201, %571 : f32
    %594 = arith.addf %592, %593 : f32
    %595 = arith.mulf %255, %572 : f32
    %596 = arith.addf %594, %595 : f32
    %c0_128 = arith.constant 0 : index
    %597 = memref.load %arg1[%c0_128] : memref<51xf32, #tpu.memory_space<smem>>
    memref.store %279, %arg1[%c0_128] : memref<51xf32, #tpu.memory_space<smem>>
    %c16_129 = arith.constant 16 : index
    %598 = memref.load %arg1[%c16_129] : memref<51xf32, #tpu.memory_space<smem>>
    memref.store %279, %arg1[%c16_129] : memref<51xf32, #tpu.memory_space<smem>>
    %c32_130 = arith.constant 32 : index
    %599 = memref.load %arg1[%c32_130] : memref<51xf32, #tpu.memory_space<smem>>
    memref.store %381, %arg1[%c32_130] : memref<51xf32, #tpu.memory_space<smem>>
    %c1_131 = arith.constant 1 : index
    %600 = memref.load %arg1[%c1_131] : memref<51xf32, #tpu.memory_space<smem>>
    memref.store %285, %arg1[%c1_131] : memref<51xf32, #tpu.memory_space<smem>>
    %c17_132 = arith.constant 17 : index
    %601 = memref.load %arg1[%c17_132] : memref<51xf32, #tpu.memory_space<smem>>
    memref.store %304, %arg1[%c17_132] : memref<51xf32, #tpu.memory_space<smem>>
    %c33_133 = arith.constant 33 : index
    %602 = memref.load %arg1[%c33_133] : memref<51xf32, #tpu.memory_space<smem>>
    memref.store %389, %arg1[%c33_133] : memref<51xf32, #tpu.memory_space<smem>>
    %c2_134 = arith.constant 2 : index
    %603 = memref.load %arg1[%c2_134] : memref<51xf32, #tpu.memory_space<smem>>
    memref.store %291, %arg1[%c2_134] : memref<51xf32, #tpu.memory_space<smem>>
    %c18_135 = arith.constant 18 : index
    %604 = memref.load %arg1[%c18_135] : memref<51xf32, #tpu.memory_space<smem>>
    memref.store %329, %arg1[%c18_135] : memref<51xf32, #tpu.memory_space<smem>>
    %c34_136 = arith.constant 34 : index
    %605 = memref.load %arg1[%c34_136] : memref<51xf32, #tpu.memory_space<smem>>
    memref.store %397, %arg1[%c34_136] : memref<51xf32, #tpu.memory_space<smem>>
    %c3_137 = arith.constant 3 : index
    %606 = memref.load %arg1[%c3_137] : memref<51xf32, #tpu.memory_space<smem>>
    memref.store %298, %arg1[%c3_137] : memref<51xf32, #tpu.memory_space<smem>>
    %c19_138 = arith.constant 19 : index
    %607 = memref.load %arg1[%c19_138] : memref<51xf32, #tpu.memory_space<smem>>
    memref.store %354, %arg1[%c19_138] : memref<51xf32, #tpu.memory_space<smem>>
    %c35_139 = arith.constant 35 : index
    %608 = memref.load %arg1[%c35_139] : memref<51xf32, #tpu.memory_space<smem>>
    memref.store %405, %arg1[%c35_139] : memref<51xf32, #tpu.memory_space<smem>>
    %c4_140 = arith.constant 4 : index
    %609 = memref.load %arg1[%c4_140] : memref<51xf32, #tpu.memory_space<smem>>
    memref.store %304, %arg1[%c4_140] : memref<51xf32, #tpu.memory_space<smem>>
    %c20_141 = arith.constant 20 : index
    %610 = memref.load %arg1[%c20_141] : memref<51xf32, #tpu.memory_space<smem>>
    memref.store %285, %arg1[%c20_141] : memref<51xf32, #tpu.memory_space<smem>>
    %c36_142 = arith.constant 36 : index
    %611 = memref.load %arg1[%c36_142] : memref<51xf32, #tpu.memory_space<smem>>
    memref.store %413, %arg1[%c36_142] : memref<51xf32, #tpu.memory_space<smem>>
    %c5_143 = arith.constant 5 : index
    %612 = memref.load %arg1[%c5_143] : memref<51xf32, #tpu.memory_space<smem>>
    memref.store %310, %arg1[%c5_143] : memref<51xf32, #tpu.memory_space<smem>>
    %c21_144 = arith.constant 21 : index
    %613 = memref.load %arg1[%c21_144] : memref<51xf32, #tpu.memory_space<smem>>
    memref.store %310, %arg1[%c21_144] : memref<51xf32, #tpu.memory_space<smem>>
    %c37_145 = arith.constant 37 : index
    %614 = memref.load %arg1[%c37_145] : memref<51xf32, #tpu.memory_space<smem>>
    memref.store %421, %arg1[%c37_145] : memref<51xf32, #tpu.memory_space<smem>>
    %c6_146 = arith.constant 6 : index
    %615 = memref.load %arg1[%c6_146] : memref<51xf32, #tpu.memory_space<smem>>
    memref.store %316, %arg1[%c6_146] : memref<51xf32, #tpu.memory_space<smem>>
    %c22_147 = arith.constant 22 : index
    %616 = memref.load %arg1[%c22_147] : memref<51xf32, #tpu.memory_space<smem>>
    memref.store %335, %arg1[%c22_147] : memref<51xf32, #tpu.memory_space<smem>>
    %c38 = arith.constant 38 : index
    %617 = memref.load %arg1[%c38] : memref<51xf32, #tpu.memory_space<smem>>
    memref.store %429, %arg1[%c38] : memref<51xf32, #tpu.memory_space<smem>>
    %c7_148 = arith.constant 7 : index
    %618 = memref.load %arg1[%c7_148] : memref<51xf32, #tpu.memory_space<smem>>
    memref.store %323, %arg1[%c7_148] : memref<51xf32, #tpu.memory_space<smem>>
    %c23_149 = arith.constant 23 : index
    %619 = memref.load %arg1[%c23_149] : memref<51xf32, #tpu.memory_space<smem>>
    memref.store %360, %arg1[%c23_149] : memref<51xf32, #tpu.memory_space<smem>>
    %c39 = arith.constant 39 : index
    %620 = memref.load %arg1[%c39] : memref<51xf32, #tpu.memory_space<smem>>
    memref.store %437, %arg1[%c39] : memref<51xf32, #tpu.memory_space<smem>>
    %c8_150 = arith.constant 8 : index
    %621 = memref.load %arg1[%c8_150] : memref<51xf32, #tpu.memory_space<smem>>
    memref.store %329, %arg1[%c8_150] : memref<51xf32, #tpu.memory_space<smem>>
    %c24_151 = arith.constant 24 : index
    %622 = memref.load %arg1[%c24_151] : memref<51xf32, #tpu.memory_space<smem>>
    memref.store %291, %arg1[%c24_151] : memref<51xf32, #tpu.memory_space<smem>>
    %c40 = arith.constant 40 : index
    %623 = memref.load %arg1[%c40] : memref<51xf32, #tpu.memory_space<smem>>
    memref.store %445, %arg1[%c40] : memref<51xf32, #tpu.memory_space<smem>>
    %c9_152 = arith.constant 9 : index
    %624 = memref.load %arg1[%c9_152] : memref<51xf32, #tpu.memory_space<smem>>
    memref.store %335, %arg1[%c9_152] : memref<51xf32, #tpu.memory_space<smem>>
    %c25_153 = arith.constant 25 : index
    %625 = memref.load %arg1[%c25_153] : memref<51xf32, #tpu.memory_space<smem>>
    memref.store %316, %arg1[%c25_153] : memref<51xf32, #tpu.memory_space<smem>>
    %c41 = arith.constant 41 : index
    %626 = memref.load %arg1[%c41] : memref<51xf32, #tpu.memory_space<smem>>
    memref.store %453, %arg1[%c41] : memref<51xf32, #tpu.memory_space<smem>>
    %c10_154 = arith.constant 10 : index
    %627 = memref.load %arg1[%c10_154] : memref<51xf32, #tpu.memory_space<smem>>
    memref.store %341, %arg1[%c10_154] : memref<51xf32, #tpu.memory_space<smem>>
    %c26_155 = arith.constant 26 : index
    %628 = memref.load %arg1[%c26_155] : memref<51xf32, #tpu.memory_space<smem>>
    memref.store %341, %arg1[%c26_155] : memref<51xf32, #tpu.memory_space<smem>>
    %c42 = arith.constant 42 : index
    %629 = memref.load %arg1[%c42] : memref<51xf32, #tpu.memory_space<smem>>
    memref.store %461, %arg1[%c42] : memref<51xf32, #tpu.memory_space<smem>>
    %c11_156 = arith.constant 11 : index
    %630 = memref.load %arg1[%c11_156] : memref<51xf32, #tpu.memory_space<smem>>
    memref.store %348, %arg1[%c11_156] : memref<51xf32, #tpu.memory_space<smem>>
    %c27_157 = arith.constant 27 : index
    %631 = memref.load %arg1[%c27_157] : memref<51xf32, #tpu.memory_space<smem>>
    memref.store %366, %arg1[%c27_157] : memref<51xf32, #tpu.memory_space<smem>>
    %c43 = arith.constant 43 : index
    %632 = memref.load %arg1[%c43] : memref<51xf32, #tpu.memory_space<smem>>
    memref.store %469, %arg1[%c43] : memref<51xf32, #tpu.memory_space<smem>>
    %c12_158 = arith.constant 12 : index
    %633 = memref.load %arg1[%c12_158] : memref<51xf32, #tpu.memory_space<smem>>
    memref.store %354, %arg1[%c12_158] : memref<51xf32, #tpu.memory_space<smem>>
    %c28_159 = arith.constant 28 : index
    %634 = memref.load %arg1[%c28_159] : memref<51xf32, #tpu.memory_space<smem>>
    memref.store %298, %arg1[%c28_159] : memref<51xf32, #tpu.memory_space<smem>>
    %c44 = arith.constant 44 : index
    %635 = memref.load %arg1[%c44] : memref<51xf32, #tpu.memory_space<smem>>
    memref.store %477, %arg1[%c44] : memref<51xf32, #tpu.memory_space<smem>>
    %c13_160 = arith.constant 13 : index
    %636 = memref.load %arg1[%c13_160] : memref<51xf32, #tpu.memory_space<smem>>
    memref.store %360, %arg1[%c13_160] : memref<51xf32, #tpu.memory_space<smem>>
    %c29_161 = arith.constant 29 : index
    %637 = memref.load %arg1[%c29_161] : memref<51xf32, #tpu.memory_space<smem>>
    memref.store %323, %arg1[%c29_161] : memref<51xf32, #tpu.memory_space<smem>>
    %c45 = arith.constant 45 : index
    %638 = memref.load %arg1[%c45] : memref<51xf32, #tpu.memory_space<smem>>
    memref.store %485, %arg1[%c45] : memref<51xf32, #tpu.memory_space<smem>>
    %c14_162 = arith.constant 14 : index
    %639 = memref.load %arg1[%c14_162] : memref<51xf32, #tpu.memory_space<smem>>
    memref.store %366, %arg1[%c14_162] : memref<51xf32, #tpu.memory_space<smem>>
    %c30_163 = arith.constant 30 : index
    %640 = memref.load %arg1[%c30_163] : memref<51xf32, #tpu.memory_space<smem>>
    memref.store %348, %arg1[%c30_163] : memref<51xf32, #tpu.memory_space<smem>>
    %c46 = arith.constant 46 : index
    %641 = memref.load %arg1[%c46] : memref<51xf32, #tpu.memory_space<smem>>
    memref.store %493, %arg1[%c46] : memref<51xf32, #tpu.memory_space<smem>>
    %c15_164 = arith.constant 15 : index
    %642 = memref.load %arg1[%c15_164] : memref<51xf32, #tpu.memory_space<smem>>
    memref.store %373, %arg1[%c15_164] : memref<51xf32, #tpu.memory_space<smem>>
    %c31_165 = arith.constant 31 : index
    %643 = memref.load %arg1[%c31_165] : memref<51xf32, #tpu.memory_space<smem>>
    memref.store %373, %arg1[%c31_165] : memref<51xf32, #tpu.memory_space<smem>>
    %c47 = arith.constant 47 : index
    %644 = memref.load %arg1[%c47] : memref<51xf32, #tpu.memory_space<smem>>
    memref.store %501, %arg1[%c47] : memref<51xf32, #tpu.memory_space<smem>>
    %c48 = arith.constant 48 : index
    %645 = memref.load %arg1[%c48] : memref<51xf32, #tpu.memory_space<smem>>
    memref.store %580, %arg1[%c48] : memref<51xf32, #tpu.memory_space<smem>>
    %c49 = arith.constant 49 : index
    %646 = memref.load %arg1[%c49] : memref<51xf32, #tpu.memory_space<smem>>
    memref.store %588, %arg1[%c49] : memref<51xf32, #tpu.memory_space<smem>>
    %c50 = arith.constant 50 : index
    %647 = memref.load %arg1[%c50] : memref<51xf32, #tpu.memory_space<smem>>
    memref.store %596, %arg1[%c50] : memref<51xf32, #tpu.memory_space<smem>>
    return
  }
}

</mosaic_0001>

<llo_original>
// kernel: tpu_custom_call.1
$region0: #{tpu_custom_call.1}
  #allocation0 [shape = 'u32[]', space=smem, size = 0x4, offset = 0x4, fixed_abs, tag = 'smem constant byte address 0x4 - core index']
  #allocation1 [shape = 'u32[144,128]{1,0:T(1,128)}', space=vmem, size = 0x12000, scoped, tag = 'internal scratch']
  %s0 = inlined_call_operand.hbm [shape: f32[38], index: 0, kind: input, shape index: {}]
  %s1 = inlined_call_operand.hbm [shape: f32[51], index: 1, kind: output, shape index: {}]
  %s2 = sld [smem:[#allocation0]]
  $region18: #{tpu_custom_call.1} parent=0
    _
  %s4 = ssub.s32 1, %s2
  %s5 = scalar_select 0, %s4, %s2
  $region1: #{tpu_custom_call.1} parent=0
    #allocation2 [shape = 'u8[512]{0}', space=smem, size = 0x200, scoped, tag = 'input window, operand 0, single buffered']
    #allocation3 [shape = 's32[1]{0}', space=sflag, size = 0x4, scoped, tag = 'scoped memory for tpu_custom_call.1']
    #allocation4 [shape = 's32[1]{0}', space=sflag, size = 0x4, scoped, tag = 'scoped memory for tpu_custom_call.1']
    #allocation5 [shape = 'u8[512]{0}', space=smem, size = 0x200, scoped, tag = 'output window, operand 0, single buffered']
    %6 = vsyncpa [#allocation3], 0
    %7 = vsyncpa [#allocation4], 0
    // Predicated region
    $region2: #{tpu_custom_call.1} parent=1 // pred_check
      _
    $region3: #{tpu_custom_call.1} parent=1 // pred_check_branch
      %9 = sbr.rel (0) target = $region5
    $region4: #{tpu_custom_call.1} parent=1 // pred_region
      %s11 = ssub.s32 16, 16
      %12 = vsyncadd [#allocation3], %s11
      %15 = dma.hbm_to_smem %s0, 16, [#allocation2], [#allocation3]
    $region5: #{tpu_custom_call.1} parent=1 // pred_fallthru
      _
    // Predicated region
    $region6: #{tpu_custom_call.1} parent=1 // pred_check
      _
    $region7: #{tpu_custom_call.1} parent=1 // pred_check_branch
      %17 = sbr.rel (0) target = $region9
    $region8: #{tpu_custom_call.1} parent=1 // pred_region
      %18 = dma.done [#allocation3], 16
    $region9: #{tpu_custom_call.1} parent=1 // pred_fallthru
      _
    %19 = sfence
    %s20 = sld [smem:[#allocation2]]
    %s21 = sld [smem:[#allocation2 + $0x1]]
    %s22 = sld [smem:[#allocation2 + $0x2]]
    %s23 = sld [smem:[#allocation2 + $0x3]]
    %s24 = sld [smem:[#allocation2 + $0x4]]
    %s25 = sld [smem:[#allocation2 + $0x5]]
    %s26 = sld [smem:[#allocation2 + $0x6]]
    %s27 = sld [smem:[#allocation2 + $0x7]]
    %s28 = sld [smem:[#allocation2 + $0x8]]
    %s29 = sld [smem:[#allocation2 + $0x9]]
    %s30 = sld [smem:[#allocation2 + $0xa]]
    %s31 = sld [smem:[#allocation2 + $0xb]]
    %s32 = sld [smem:[#allocation2 + $0xc]]
    %s33 = sld [smem:[#allocation2 + $0xd]]
    %s34 = sld [smem:[#allocation2 + $0xe]]
    %s35 = sld [smem:[#allocation2 + $0xf]]
    %s36 = sld [smem:[#allocation2 + $0x10]]
    %s37 = sld [smem:[#allocation2 + $0x11]]
    %s38 = sld [smem:[#allocation2 + $0x12]]
    %s39 = sld [smem:[#allocation2 + $0x13]]
    %s40 = sld [smem:[#allocation2 + $0x14]]
    %s41 = sld [smem:[#allocation2 + $0x15]]
    %s42 = sld [smem:[#allocation2 + $0x16]]
    %s43 = sld [smem:[#allocation2 + $0x17]]
    %s44 = sld [smem:[#allocation2 + $0x18]]
    %s45 = sld [smem:[#allocation2 + $0x19]]
    %s46 = sld [smem:[#allocation2 + $0x1a]]
    %s47 = sld [smem:[#allocation2 + $0x1b]]
    %s48 = sld [smem:[#allocation2 + $0x1c]]
    %s49 = sld [smem:[#allocation2 + $0x1d]]
    %s50 = sld [smem:[#allocation2 + $0x1e]]
    %s51 = sld [smem:[#allocation2 + $0x1f]]
    %s52 = sld [smem:[#allocation2 + $0x20]]
    %s53 = sld [smem:[#allocation2 + $0x21]]
    %s54 = sld [smem:[#allocation2 + $0x22]]
    %s55 = sld [smem:[#allocation2 + $0x23]]
    %s56 = sld [smem:[#allocation2 + $0x24]]
    %s57 = sld [smem:[#allocation2 + $0x25]]
    %s58 = smul.f32 %s20, %s20
    %s59 = smul.f32 %s21, %s21
    %s60 = sadd.f32 %s58, %s59
    %s61 = smul.f32 %s22, %s22
    %s62 = sadd.f32 %s60, %s61
    %s63 = smul.f32 %s62, -0.16666667
    %s64 = sadd.f32 %s63, 1.0
    %s65 = smul.f32 %s62, -0.041666668
    %s66 = sadd.f32 %s65, 0.5
    %s67 = smul.f32 %s62, -0.008333334
    %s68 = sadd.f32 %s67, 0.16666667
    %s69 = smul.f32 %s62, %s62
    %s70 = smul.f32 %s69, 0.008333334
    %s71 = sadd.f32 %s64, %s70
    %s72 = smul.f32 %s69, 0.0013888889
    %s73 = sadd.f32 %s66, %s72
    %s74 = smul.f32 %s69, 0.0001984127
    %s75 = sadd.f32 %s68, %s74
    %s76 = smul.f32 %s69, %s62
    %s77 = smul.f32 %s76, -0.0001984127
    %s78 = sadd.f32 %s71, %s77
    %s79 = smul.f32 %s76, -2.4801588e-05
    %s80 = sadd.f32 %s73, %s79
    %s81 = smul.f32 %s76, -2.7557319e-06
    %s82 = sadd.f32 %s75, %s81
    %s83 = smul.f32 %s76, %s62
    %s84 = smul.f32 %s83, 2.7557319e-06
    %s85 = sadd.f32 %s78, %s84
    %s86 = smul.f32 %s83, 2.755732e-07
    %s87 = sadd.f32 %s80, %s86
    %s88 = smul.f32 %s83, 2.5052108e-08
    %s89 = sadd.f32 %s82, %s88
    %s90 = smul.f32 %s83, %s62
    %s91 = smul.f32 %s90, -2.5052108e-08
    %s92 = sadd.f32 %s85, %s91
    %s93 = smul.f32 %s90, -2.0876756e-09
    %s94 = sadd.f32 %s87, %s93
    %s95 = smul.f32 %s90, -1.6059044e-10
    %s96 = sadd.f32 %s89, %s95
    %s97 = smul.f32 %s90, %s62
    %s98 = smul.f32 %s97, 1.6059044e-10
    %s99 = sadd.f32 %s92, %s98
    %s100 = smul.f32 %s97, 1.1470745e-11
    %s101 = sadd.f32 %s94, %s100
    %s102 = smul.f32 %s97, 7.6471636e-13
    %s103 = sadd.f32 %s96, %s102
    %s104 = smul.f32 %s97, %s62
    %s105 = smul.f32 %s104, -7.6471636e-13
    %s106 = sadd.f32 %s99, %s105
    %s107 = smul.f32 %s104, -4.7794773e-14
    %s108 = sadd.f32 %s101, %s107
    %s109 = smul.f32 %s104, -2.8114574e-15
    %s110 = sadd.f32 %s103, %s109
    %s111 = smul.f32 %s104, %s62
    %s112 = smul.f32 %s111, 2.8114574e-15
    %s113 = sadd.f32 %s106, %s112
    %s114 = smul.f32 %s111, 1.5619207e-16
    %s115 = sadd.f32 %s108, %s114
    %s116 = smul.f32 %s111, 8.220635e-18
    %s117 = sadd.f32 %s110, %s116
    %s118 = smul.f32 %s111, %s62
    %s119 = smul.f32 %s118, -8.220635e-18
    %s120 = sadd.f32 %s113, %s119
    %s121 = smul.f32 %s118, -4.1103176e-19
    %s122 = sadd.f32 %s115, %s121
    %s123 = smul.f32 %s118, -1.9572942e-20
    %s124 = sadd.f32 %s117, %s123
    %s125 = smul.f32 %s118, %s62
    %s126 = smul.f32 %s125, 1.9572942e-20
    %s127 = sadd.f32 %s120, %s126
    %s128 = smul.f32 %s125, 8.896791e-22
    %s129 = sadd.f32 %s122, %s128
    %s130 = smul.f32 %s125, 3.8681703e-23
    %s131 = sadd.f32 %s124, %s130
    %s132 = ssub.f32 0.0, %s22
    %s133 = ssub.f32 0.0, %s20
    %s134 = ssub.f32 0.0, %s21
    %s135 = smul.f32 %s132, %s22
    %s136 = sadd.f32 %s135, 0.0
    %s137 = smul.f32 %s21, %s134
    %s138 = sadd.f32 %s136, %s137
    %s139 = smul.f32 %s132, 0.0
    %s140 = sadd.f32 %s139, 0.0
    %s141 = sadd.f32 %s140, %s139
    %s142 = smul.f32 %s21, %s20
    %s143 = sadd.f32 %s141, %s142
    %s144 = smul.f32 %s21, 0.0
    %s145 = sadd.f32 %s144, 0.0
    %s146 = smul.f32 %s132, %s133
    %s147 = sadd.f32 %s145, %s146
    %s148 = sadd.f32 %s147, %s144
    %s149 = smul.f32 %s22, 0.0
    %s150 = sadd.f32 %s149, 0.0
    %s151 = sadd.f32 %s150, %s149
    %s152 = smul.f32 %s133, %s134
    %s153 = sadd.f32 %s151, %s152
    %s154 = sadd.f32 %s136, 0.0
    %s155 = smul.f32 %s133, %s20
    %s156 = sadd.f32 %s154, %s155
    %s157 = smul.f32 %s22, %s21
    %s158 = sadd.f32 %s157, 0.0
    %s159 = smul.f32 %s133, 0.0
    %s160 = sadd.f32 %s158, %s159
    %s161 = sadd.f32 %s160, %s159
    %s162 = smul.f32 %s134, 0.0
    %s163 = sadd.f32 %s162, 0.0
    %s164 = smul.f32 %s20, %s22
    %s165 = sadd.f32 %s163, %s164
    %s166 = sadd.f32 %s165, %s162
    %s167 = smul.f32 %s134, %s132
    %s168 = sadd.f32 %s167, 0.0
    %s169 = smul.f32 %s20, 0.0
    %s170 = sadd.f32 %s168, %s169
    %s171 = sadd.f32 %s170, %s169
    %s172 = sadd.f32 %s137, 0.0
    %s173 = sadd.f32 %s172, %s155
    %s174 = sadd.f32 %s173, 0.0
    %s175 = smul.f32 %s127, 0.0
    %s176 = sadd.f32 %s175, 1.0
    %s177 = smul.f32 %s129, %s138
    %s178 = sadd.f32 %s176, %s177
    %s179 = smul.f32 %s127, %s132
    %s180 = sadd.f32 %s179, 0.0
    %s181 = smul.f32 %s129, %s143
    %s182 = sadd.f32 %s180, %s181
    %s183 = smul.f32 %s127, %s21
    %s184 = sadd.f32 %s183, 0.0
    %s185 = smul.f32 %s129, %s148
    %s186 = sadd.f32 %s184, %s185
    %s187 = smul.f32 %s127, %s22
    %s188 = sadd.f32 %s187, 0.0
    %s189 = smul.f32 %s129, %s153
    %s190 = sadd.f32 %s188, %s189
    %s191 = smul.f32 %s129, %s156
    %s192 = sadd.f32 %s176, %s191
    %s193 = smul.f32 %s127, %s133
    %s194 = sadd.f32 %s193, 0.0
    %s195 = smul.f32 %s129, %s161
    %s196 = sadd.f32 %s194, %s195
    %s197 = smul.f32 %s127, %s134
    %s198 = sadd.f32 %s197, 0.0
    %s199 = smul.f32 %s129, %s166
    %s200 = sadd.f32 %s198, %s199
    %s201 = smul.f32 %s127, %s20
    %s202 = sadd.f32 %s201, 0.0
    %s203 = smul.f32 %s129, %s171
    %s204 = sadd.f32 %s202, %s203
    %s205 = smul.f32 %s129, %s174
    %s206 = sadd.f32 %s176, %s205
    %s207 = smul.f32 %s129, 0.0
    %s208 = sadd.f32 %s207, 1.0
    %s209 = smul.f32 %s131, %s138
    %s210 = sadd.f32 %s208, %s209
    %s211 = smul.f32 %s129, %s132
    %s212 = sadd.f32 %s211, 0.0
    %s213 = smul.f32 %s131, %s143
    %s214 = sadd.f32 %s212, %s213
    %s215 = smul.f32 %s129, %s21
    %s216 = sadd.f32 %s215, 0.0
    %s217 = smul.f32 %s131, %s148
    %s218 = sadd.f32 %s216, %s217
    %s219 = smul.f32 %s129, %s22
    %s220 = sadd.f32 %s219, 0.0
    %s221 = smul.f32 %s131, %s153
    %s222 = sadd.f32 %s220, %s221
    %s223 = smul.f32 %s131, %s156
    %s224 = sadd.f32 %s208, %s223
    %s225 = smul.f32 %s129, %s133
    %s226 = sadd.f32 %s225, 0.0
    %s227 = smul.f32 %s131, %s161
    %s228 = sadd.f32 %s226, %s227
    %s229 = smul.f32 %s129, %s134
    %s230 = sadd.f32 %s229, 0.0
    %s231 = smul.f32 %s131, %s166
    %s232 = sadd.f32 %s230, %s231
    %s233 = smul.f32 %s129, %s20
    %s234 = sadd.f32 %s233, 0.0
    %s235 = smul.f32 %s131, %s171
    %s236 = sadd.f32 %s234, %s235
    %s237 = smul.f32 %s131, %s174
    %s238 = sadd.f32 %s208, %s237
    %s239 = smul.f32 %s210, %s23
    %s240 = sadd.f32 %s239, 0.0
    %s241 = smul.f32 %s214, %s24
    %s242 = sadd.f32 %s240, %s241
    %s243 = smul.f32 %s218, %s25
    %s244 = sadd.f32 %s242, %s243
    %s245 = smul.f32 %s222, %s23
    %s246 = sadd.f32 %s245, 0.0
    %s247 = smul.f32 %s224, %s24
    %s248 = sadd.f32 %s246, %s247
    %s249 = smul.f32 %s228, %s25
    %s250 = sadd.f32 %s248, %s249
    %s251 = smul.f32 %s232, %s23
    %s252 = sadd.f32 %s251, 0.0
    %s253 = smul.f32 %s236, %s24
    %s254 = sadd.f32 %s252, %s253
    %s255 = smul.f32 %s238, %s25
    %s256 = sadd.f32 %s254, %s255
    %s257 = smul.f32 %s178, %s244
    %s258 = sadd.f32 %s257, 0.0
    %s259 = smul.f32 %s190, %s250
    %s260 = sadd.f32 %s258, %s259
    %s261 = smul.f32 %s200, %s256
    %s262 = sadd.f32 %s260, %s261
    %s263 = smul.f32 %s182, %s244
    %s264 = sadd.f32 %s263, 0.0
    %s265 = smul.f32 %s192, %s250
    %s266 = sadd.f32 %s264, %s265
    %s267 = smul.f32 %s204, %s256
    %s268 = sadd.f32 %s266, %s267
    %s269 = smul.f32 %s186, %s244
    %s270 = sadd.f32 %s269, 0.0
    %s271 = smul.f32 %s196, %s250
    %s272 = sadd.f32 %s270, %s271
    %s273 = smul.f32 %s206, %s256
    %s274 = sadd.f32 %s272, %s273
    %s275 = smul.f32 %s26, %s178
    %s276 = sadd.f32 %s275, 0.0
    %s277 = smul.f32 %s27, %s182
    %s278 = sadd.f32 %s276, %s277
    %s279 = smul.f32 %s28, %s186
    %s280 = sadd.f32 %s278, %s279
    %s281 = smul.f32 %s26, %s190
    %s282 = sadd.f32 %s281, 0.0
    %s283 = smul.f32 %s27, %s192
    %s284 = sadd.f32 %s282, %s283
    %s285 = smul.f32 %s28, %s196
    %s286 = sadd.f32 %s284, %s285
    %s287 = smul.f32 %s26, %s200
    %s288 = sadd.f32 %s287, 0.0
    %s289 = smul.f32 %s27, %s204
    %s290 = sadd.f32 %s288, %s289
    %s291 = smul.f32 %s28, %s206
    %s292 = sadd.f32 %s290, %s291
    %s293 = smul.f32 %s26, %s262
    %s294 = sadd.f32 %s293, 0.0
    %s295 = smul.f32 %s27, %s268
    %s296 = sadd.f32 %s294, %s295
    %s297 = smul.f32 %s28, %s274
    %s298 = sadd.f32 %s296, %s297
    %s299 = ssub.f32 %s29, %s298
    %s300 = smul.f32 %s30, %s178
    %s301 = sadd.f32 %s300, 0.0
    %s302 = smul.f32 %s31, %s182
    %s303 = sadd.f32 %s301, %s302
    %s304 = smul.f32 %s32, %s186
    %s305 = sadd.f32 %s303, %s304
    %s306 = smul.f32 %s30, %s190
    %s307 = sadd.f32 %s306, 0.0
    %s308 = smul.f32 %s31, %s192
    %s309 = sadd.f32 %s307, %s308
    %s310 = smul.f32 %s32, %s196
    %s311 = sadd.f32 %s309, %s310
    %s312 = smul.f32 %s30, %s200
    %s313 = sadd.f32 %s312, 0.0
    %s314 = smul.f32 %s31, %s204
    %s315 = sadd.f32 %s313, %s314
    %s316 = smul.f32 %s32, %s206
    %s317 = sadd.f32 %s315, %s316
    %s318 = smul.f32 %s30, %s262
    %s319 = sadd.f32 %s318, 0.0
    %s320 = smul.f32 %s31, %s268
    %s321 = sadd.f32 %s319, %s320
    %s322 = smul.f32 %s32, %s274
    %s323 = sadd.f32 %s321, %s322
    %s324 = ssub.f32 %s33, %s323
    %s325 = smul.f32 %s34, %s178
    %s326 = sadd.f32 %s325, 0.0
    %s327 = smul.f32 %s35, %s182
    %s328 = sadd.f32 %s326, %s327
    %s329 = smul.f32 %s36, %s186
    %s330 = sadd.f32 %s328, %s329
    %s331 = smul.f32 %s34, %s190
    %s332 = sadd.f32 %s331, 0.0
    %s333 = smul.f32 %s35, %s192
    %s334 = sadd.f32 %s332, %s333
    %s335 = smul.f32 %s36, %s196
    %s336 = sadd.f32 %s334, %s335
    %s337 = smul.f32 %s34, %s200
    %s338 = sadd.f32 %s337, 0.0
    %s339 = smul.f32 %s35, %s204
    %s340 = sadd.f32 %s338, %s339
    %s341 = smul.f32 %s36, %s206
    %s342 = sadd.f32 %s340, %s341
    %s343 = smul.f32 %s34, %s262
    %s344 = sadd.f32 %s343, 0.0
    %s345 = smul.f32 %s35, %s268
    %s346 = sadd.f32 %s344, %s345
    %s347 = smul.f32 %s36, %s274
    %s348 = sadd.f32 %s346, %s347
    %s349 = ssub.f32 %s37, %s348
    %s350 = smul.f32 %s38, %s178
    %s351 = sadd.f32 %s350, 0.0
    %s352 = smul.f32 %s39, %s182
    %s353 = sadd.f32 %s351, %s352
    %s354 = smul.f32 %s40, %s186
    %s355 = sadd.f32 %s353, %s354
    %s356 = smul.f32 %s38, %s190
    %s357 = sadd.f32 %s356, 0.0
    %s358 = smul.f32 %s39, %s192
    %s359 = sadd.f32 %s357, %s358
    %s360 = smul.f32 %s40, %s196
    %s361 = sadd.f32 %s359, %s360
    %s362 = smul.f32 %s38, %s200
    %s363 = sadd.f32 %s362, 0.0
    %s364 = smul.f32 %s39, %s204
    %s365 = sadd.f32 %s363, %s364
    %s366 = smul.f32 %s40, %s206
    %s367 = sadd.f32 %s365, %s366
    %s368 = smul.f32 %s38, %s262
    %s369 = sadd.f32 %s368, 0.0
    %s370 = smul.f32 %s39, %s268
    %s371 = sadd.f32 %s369, %s370
    %s372 = smul.f32 %s40, %s274
    %s373 = sadd.f32 %s371, %s372
    %s374 = ssub.f32 %s41, %s373
    %s375 = smul.f32 %s280, %s42
    %s376 = sadd.f32 %s375, 0.0
    %s377 = smul.f32 %s305, %s46
    %s378 = sadd.f32 %s376, %s377
    %s379 = smul.f32 %s330, %s50
    %s380 = sadd.f32 %s378, %s379
    %s381 = smul.f32 %s355, %s54
    %s382 = sadd.f32 %s380, %s381
    %s383 = smul.f32 %s280, %s43
    %s384 = sadd.f32 %s383, 0.0
    %s385 = smul.f32 %s305, %s47
    %s386 = sadd.f32 %s384, %s385
    %s387 = smul.f32 %s330, %s51
    %s388 = sadd.f32 %s386, %s387
    %s389 = smul.f32 %s355, %s55
    %s390 = sadd.f32 %s388, %s389
    %s391 = smul.f32 %s280, %s44
    %s392 = sadd.f32 %s391, 0.0
    %s393 = smul.f32 %s305, %s48
    %s394 = sadd.f32 %s392, %s393
    %s395 = smul.f32 %s330, %s52
    %s396 = sadd.f32 %s394, %s395
    %s397 = smul.f32 %s355, %s56
    %s398 = sadd.f32 %s396, %s397
    %s399 = smul.f32 %s280, %s45
    %s400 = sadd.f32 %s399, 0.0
    %s401 = smul.f32 %s305, %s49
    %s402 = sadd.f32 %s400, %s401
    %s403 = smul.f32 %s330, %s53
    %s404 = sadd.f32 %s402, %s403
    %s405 = smul.f32 %s355, %s57
    %s406 = sadd.f32 %s404, %s405
    %s407 = smul.f32 %s286, %s42
    %s408 = sadd.f32 %s407, 0.0
    %s409 = smul.f32 %s311, %s46
    %s410 = sadd.f32 %s408, %s409
    %s411 = smul.f32 %s336, %s50
    %s412 = sadd.f32 %s410, %s411
    %s413 = smul.f32 %s361, %s54
    %s414 = sadd.f32 %s412, %s413
    %s415 = smul.f32 %s286, %s43
    %s416 = sadd.f32 %s415, 0.0
    %s417 = smul.f32 %s311, %s47
    %s418 = sadd.f32 %s416, %s417
    %s419 = smul.f32 %s336, %s51
    %s420 = sadd.f32 %s418, %s419
    %s421 = smul.f32 %s361, %s55
    %s422 = sadd.f32 %s420, %s421
    %s423 = smul.f32 %s286, %s44
    %s424 = sadd.f32 %s423, 0.0
    %s425 = smul.f32 %s311, %s48
    %s426 = sadd.f32 %s424, %s425
    %s427 = smul.f32 %s336, %s52
    %s428 = sadd.f32 %s426, %s427
    %s429 = smul.f32 %s361, %s56
    %s430 = sadd.f32 %s428, %s429
    %s431 = smul.f32 %s286, %s45
    %s432 = sadd.f32 %s431, 0.0
    %s433 = smul.f32 %s311, %s49
    %s434 = sadd.f32 %s432, %s433
    %s435 = smul.f32 %s336, %s53
    %s436 = sadd.f32 %s434, %s435
    %s437 = smul.f32 %s361, %s57
    %s438 = sadd.f32 %s436, %s437
    %s439 = smul.f32 %s292, %s42
    %s440 = sadd.f32 %s439, 0.0
    %s441 = smul.f32 %s317, %s46
    %s442 = sadd.f32 %s440, %s441
    %s443 = smul.f32 %s342, %s50
    %s444 = sadd.f32 %s442, %s443
    %s445 = smul.f32 %s367, %s54
    %s446 = sadd.f32 %s444, %s445
    %s447 = smul.f32 %s292, %s43
    %s448 = sadd.f32 %s447, 0.0
    %s449 = smul.f32 %s317, %s47
    %s450 = sadd.f32 %s448, %s449
    %s451 = smul.f32 %s342, %s51
    %s452 = sadd.f32 %s450, %s451
    %s453 = smul.f32 %s367, %s55
    %s454 = sadd.f32 %s452, %s453
    %s455 = smul.f32 %s292, %s44
    %s456 = sadd.f32 %s455, 0.0
    %s457 = smul.f32 %s317, %s48
    %s458 = sadd.f32 %s456, %s457
    %s459 = smul.f32 %s342, %s52
    %s460 = sadd.f32 %s458, %s459
    %s461 = smul.f32 %s367, %s56
    %s462 = sadd.f32 %s460, %s461
    %s463 = smul.f32 %s292, %s45
    %s464 = sadd.f32 %s463, 0.0
    %s465 = smul.f32 %s317, %s49
    %s466 = sadd.f32 %s464, %s465
    %s467 = smul.f32 %s342, %s53
    %s468 = sadd.f32 %s466, %s467
    %s469 = smul.f32 %s367, %s57
    %s470 = sadd.f32 %s468, %s469
    %s471 = smul.f32 %s299, %s42
    %s472 = sadd.f32 %s471, 0.0
    %s473 = smul.f32 %s324, %s46
    %s474 = sadd.f32 %s472, %s473
    %s475 = smul.f32 %s349, %s50
    %s476 = sadd.f32 %s474, %s475
    %s477 = smul.f32 %s374, %s54
    %s478 = sadd.f32 %s476, %s477
    %s479 = smul.f32 %s299, %s43
    %s480 = sadd.f32 %s479, 0.0
    %s481 = smul.f32 %s324, %s47
    %s482 = sadd.f32 %s480, %s481
    %s483 = smul.f32 %s349, %s51
    %s484 = sadd.f32 %s482, %s483
    %s485 = smul.f32 %s374, %s55
    %s486 = sadd.f32 %s484, %s485
    %s487 = smul.f32 %s299, %s44
    %s488 = sadd.f32 %s487, 0.0
    %s489 = smul.f32 %s324, %s48
    %s490 = sadd.f32 %s488, %s489
    %s491 = smul.f32 %s349, %s52
    %s492 = sadd.f32 %s490, %s491
    %s493 = smul.f32 %s374, %s56
    %s494 = sadd.f32 %s492, %s493
    %s495 = smul.f32 %s299, %s45
    %s496 = sadd.f32 %s495, 0.0
    %s497 = smul.f32 %s324, %s49
    %s498 = sadd.f32 %s496, %s497
    %s499 = smul.f32 %s349, %s53
    %s500 = sadd.f32 %s498, %s499
    %s501 = smul.f32 %s374, %s57
    %s502 = sadd.f32 %s500, %s501
    %s503 = smul.f32 %s32, %s37
    %s504 = smul.f32 %s36, %s33
    %s505 = ssub.f32 %s503, %s504
    %s506 = smul.f32 %s27, %s505
    %s507 = smul.f32 %s31, %s37
    %s508 = smul.f32 %s35, %s33
    %s509 = ssub.f32 %s507, %s508
    %s510 = smul.f32 %s28, %s509
    %s511 = ssub.f32 %s506, %s510
    %s512 = smul.f32 %s31, %s36
    %s513 = smul.f32 %s35, %s32
    %s514 = ssub.f32 %s512, %s513
    %s515 = smul.f32 %s29, %s514
    %s516 = sadd.f32 %s511, %s515
    %s517 = smul.f32 %s26, %s505
    %s518 = smul.f32 %s30, %s37
    %s519 = smul.f32 %s34, %s33
    %s520 = ssub.f32 %s518, %s519
    %s521 = smul.f32 %s28, %s520
    %s522 = ssub.f32 %s517, %s521
    %s523 = smul.f32 %s30, %s36
    %s524 = smul.f32 %s34, %s32
    %s525 = ssub.f32 %s523, %s524
    %s526 = smul.f32 %s29, %s525
    %s527 = sadd.f32 %s522, %s526
    %s528 = smul.f32 %s26, %s509
    %s529 = smul.f32 %s27, %s520
    %s530 = ssub.f32 %s528, %s529
    %s531 = smul.f32 %s30, %s35
    %s532 = smul.f32 %s34, %s31
    %s533 = ssub.f32 %s531, %s532
    %s534 = smul.f32 %s29, %s533
    %s535 = sadd.f32 %s530, %s534
    %s536 = smul.f32 %s26, %s514
    %s537 = smul.f32 %s27, %s525
    %s538 = ssub.f32 %s536, %s537
    %s539 = smul.f32 %s28, %s533
    %s540 = sadd.f32 %s538, %s539
    %s541 = ssub.f32 0.0, %s516
    %s542 = ssub.f32 0.0, %s535
    %s543 = smul.f32 %s38, %s541
    %s544 = sadd.f32 %s543, 0.0
    %s545 = smul.f32 %s39, %s527
    %s546 = sadd.f32 %s544, %s545
    %s547 = smul.f32 %s40, %s542
    %s548 = sadd.f32 %s546, %s547
    %s549 = smul.f32 %s41, %s540
    %s550 = sadd.f32 %s548, %s549
    %v551 = vstv %s550
    %v552 = vrcp.pop %v551
    %s553 = vtos %v552
    %s554 = smul.f32 %s541, %s553
    %s555 = smul.f32 %s527, %s553
    %s556 = smul.f32 %s542, %s553
    %s557 = smul.f32 %s540, %s553
    %s558 = smul.f32 %s178, %s554
    %s559 = sadd.f32 %s558, 0.0
    %s560 = smul.f32 %s182, %s555
    %s561 = sadd.f32 %s559, %s560
    %s562 = smul.f32 %s186, %s556
    %s563 = sadd.f32 %s561, %s562
    %s564 = smul.f32 %s244, %s557
    %s565 = sadd.f32 %s563, %s564
    %s566 = smul.f32 %s190, %s554
    %s567 = sadd.f32 %s566, 0.0
    %s568 = smul.f32 %s192, %s555
    %s569 = sadd.f32 %s567, %s568
    %s570 = smul.f32 %s196, %s556
    %s571 = sadd.f32 %s569, %s570
    %s572 = smul.f32 %s250, %s557
    %s573 = sadd.f32 %s571, %s572
    %s574 = smul.f32 %s200, %s554
    %s575 = sadd.f32 %s574, 0.0
    %s576 = smul.f32 %s204, %s555
    %s577 = sadd.f32 %s575, %s576
    %s578 = smul.f32 %s206, %s556
    %s579 = sadd.f32 %s577, %s578
    %s580 = smul.f32 %s256, %s557
    %s581 = sadd.f32 %s579, %s580
    %s582 = scalar_lea.smem [#allocation5], 0
    %583 = sst [smem:[%s582]] %s280
    %s584 = scalar_lea.smem [#allocation5], 16
    %585 = sst [smem:[%s584]] %s280
    %s586 = scalar_lea.smem [#allocation5], 32
    %587 = sst [smem:[%s586]] %s382
    %s588 = scalar_lea.smem [#allocation5], 1
    %589 = sst [smem:[%s588]] %s286
    %s590 = scalar_lea.smem [#allocation5], 17
    %591 = sst [smem:[%s590]] %s305
    %s592 = scalar_lea.smem [#allocation5], 33
    %593 = sst [smem:[%s592]] %s390
    %s594 = scalar_lea.smem [#allocation5], 2
    %595 = sst [smem:[%s594]] %s292
    %s596 = scalar_lea.smem [#allocation5], 18
    %597 = sst [smem:[%s596]] %s330
    %s598 = scalar_lea.smem [#allocation5], 34
    %599 = sst [smem:[%s598]] %s398
    %s600 = scalar_lea.smem [#allocation5], 3
    %601 = sst [smem:[%s600]] %s299
    %s602 = scalar_lea.smem [#allocation5], 19
    %603 = sst [smem:[%s602]] %s355
    %s604 = scalar_lea.smem [#allocation5], 35
    %605 = sst [smem:[%s604]] %s406
    %s606 = scalar_lea.smem [#allocation5], 4
    %607 = sst [smem:[%s606]] %s305
    %s608 = scalar_lea.smem [#allocation5], 20
    %609 = sst [smem:[%s608]] %s286
    %s610 = scalar_lea.smem [#allocation5], 36
    %611 = sst [smem:[%s610]] %s414
    %s612 = scalar_lea.smem [#allocation5], 5
    %613 = sst [smem:[%s612]] %s311
    %s614 = scalar_lea.smem [#allocation5], 21
    %615 = sst [smem:[%s614]] %s311
    %s616 = scalar_lea.smem [#allocation5], 37
    %617 = sst [smem:[%s616]] %s422
    %s618 = scalar_lea.smem [#allocation5], 6
    %619 = sst [smem:[%s618]] %s317
    %s620 = scalar_lea.smem [#allocation5], 22
    %621 = sst [smem:[%s620]] %s336
    %s622 = scalar_lea.smem [#allocation5], 38
    %623 = sst [smem:[%s622]] %s430
    %s624 = scalar_lea.smem [#allocation5], 7
    %625 = sst [smem:[%s624]] %s324
    %s626 = scalar_lea.smem [#allocation5], 23
    %627 = sst [smem:[%s626]] %s361
    %s628 = scalar_lea.smem [#allocation5], 39
    %629 = sst [smem:[%s628]] %s438
    %s630 = scalar_lea.smem [#allocation5], 8
    %631 = sst [smem:[%s630]] %s330
    %s632 = scalar_lea.smem [#allocation5], 24
    %633 = sst [smem:[%s632]] %s292
    %s634 = scalar_lea.smem [#allocation5], 40
    %635 = sst [smem:[%s634]] %s446
    %s636 = scalar_lea.smem [#allocation5], 9
    %637 = sst [smem:[%s636]] %s336
    %s638 = scalar_lea.smem [#allocation5], 25
    %639 = sst [smem:[%s638]] %s317
    %s640 = scalar_lea.smem [#allocation5], 41
    %641 = sst [smem:[%s640]] %s454
    %s642 = scalar_lea.smem [#allocation5], 10
    %643 = sst [smem:[%s642]] %s342
    %s644 = scalar_lea.smem [#allocation5], 26
    %645 = sst [smem:[%s644]] %s342
    %s646 = scalar_lea.smem [#allocation5], 42
    %647 = sst [smem:[%s646]] %s462
    %s648 = scalar_lea.smem [#allocation5], 11
    %649 = sst [smem:[%s648]] %s349
    %s650 = scalar_lea.smem [#allocation5], 27
    %651 = sst [smem:[%s650]] %s367
    %s652 = scalar_lea.smem [#allocation5], 43
    %653 = sst [smem:[%s652]] %s470
    %s654 = scalar_lea.smem [#allocation5], 12
    %655 = sst [smem:[%s654]] %s355
    %s656 = scalar_lea.smem [#allocation5], 28
    %657 = sst [smem:[%s656]] %s299
    %s658 = scalar_lea.smem [#allocation5], 44
    %659 = sst [smem:[%s658]] %s478
    %s660 = scalar_lea.smem [#allocation5], 13
    %661 = sst [smem:[%s660]] %s361
    %s662 = scalar_lea.smem [#allocation5], 29
    %663 = sst [smem:[%s662]] %s324
    %s664 = scalar_lea.smem [#allocation5], 45
    %665 = sst [smem:[%s664]] %s486
    %s666 = scalar_lea.smem [#allocation5], 14
    %667 = sst [smem:[%s666]] %s367
    %s668 = scalar_lea.smem [#allocation5], 30
    %669 = sst [smem:[%s668]] %s349
    %s670 = scalar_lea.smem [#allocation5], 46
    %671 = sst [smem:[%s670]] %s494
    %s672 = scalar_lea.smem [#allocation5], 15
    %673 = sst [smem:[%s672]] %s374
    %s674 = scalar_lea.smem [#allocation5], 31
    %675 = sst [smem:[%s674]] %s374
    %s676 = scalar_lea.smem [#allocation5], 47
    %677 = sst [smem:[%s676]] %s502
    %s678 = scalar_lea.smem [#allocation5], 48
    %679 = sst [smem:[%s678]] %s565
    %s680 = scalar_lea.smem [#allocation5], 49
    %681 = sst [smem:[%s680]] %s573
    %s682 = scalar_lea.smem [#allocation5], 50
    %683 = sst [smem:[%s682]] %s581
    // Predicated region
    $region10: #{tpu_custom_call.1} parent=1 // pred_check
      _
    $region11: #{tpu_custom_call.1} parent=1 // pred_check_branch
      %685 = sbr.rel (0) target = $region13
    $region12: #{tpu_custom_call.1} parent=1 // pred_region
      %s687 = ssub.s32 16, 16
      %688 = vsyncadd [#allocation4], %s687
      %691 = dma.smem_to_hbm [#allocation5], 16, %s1, [#allocation4]
    $region13: #{tpu_custom_call.1} parent=1 // pred_fallthru
      _
    // Predicated region
    $region14: #{tpu_custom_call.1} parent=1 // pred_check
      _
    $region15: #{tpu_custom_call.1} parent=1 // pred_check_branch
      %693 = sbr.rel (0) target = $region17
    $region16: #{tpu_custom_call.1} parent=1 // pred_region
      %694 = dma.done [#allocation4], 16
    $region17: #{tpu_custom_call.1} parent=1 // pred_fallthru
      _
    %695 = sfence
    %696 = vsyncpa [#allocation3], 1
    %697 = vsyncpa [#allocation4], 1

</llo_original>
